<compile_context>
chip_gen: v7x
topology: tpu7x:2x2x1
jax: 0.10.0
libtpu: 0.0.40
codegen_flags: <defaults>
</compile_context>

<pallas_src>
import functools

import jax
import jax.numpy as jnp
from jax import lax
from jax.experimental import pallas as pl
from jax.experimental.pallas import tpu as pltpu


# -----------------------------------------------------------------------------
# Pallas kernel: whole DoubleConv for one batch element, channel-major layout.
# -----------------------------------------------------------------------------
def _double_conv_kernel(W,
                        x_ref, mask_ref,
                        sc_s_ref, bi_s_ref, sc1_ref, bi1_ref, wa_ref, ba_ref,
                        sc2_ref, bi2_ref, wb_ref, bb_ref,
                        o_ref,
                        bufa_ref, bufb_ref, ima_ref, imb_ref):
    M = x_ref.shape[-1]                       # H * W (lane dimension)
    cout = o_ref.shape[1]

    def stash(buf_ref, z):
        # One aligned full-width store: [zero halo | data | zero halo].
        p0 = (buf_ref.shape[-1] - M) // 2     # = 128
        halo = jnp.zeros((z.shape[0], p0), jnp.float32)
        buf_ref[...] = jnp.concatenate([halo, z, halo], axis=1)
        return p0

    def build_im2col(buf_ref, im_ref, p0):
        # Rows [t*C, (t+1)*C) of the im2col matrix = tap-t lane-shifted
        # channels, boundary-masked (masks kill column wrap + out-of-range rows).
        c = buf_ref.shape[0]
        for ky in range(3):
            for kx in range(3):
                t = ky * 3 + kx
                s = (ky - 1) * W + (kx - 1)
                patch = buf_ref[:, p0 + s:p0 + s + M]            # (C, M) f32
                im_ref[t * c:(t + 1) * c, :] = patch * mask_ref[t:t + 1, :]

    x = x_ref[0]                                                 # (Cin, M) f32

    # --- fused shortcut conv + conv1 ----------------------------------------
    # Stack BN_s(x) and relu(BN_1(x)) channel-wise; the block-diagonal weight
    # produces [shortcut ; mid] in a single MXU matmul (K = 18*Cin).
    xs = x * sc_s_ref[...] + bi_s_ref[...]
    x1 = jnp.maximum(x * sc1_ref[...] + bi1_ref[...], 0.0)
    p0 = stash(bufa_ref, jnp.concatenate([xs, x1], axis=0))
    build_im2col(bufa_ref, ima_ref, p0)
    res_a = jnp.dot(wa_ref[...], ima_ref[...].astype(jnp.bfloat16),
                    preferred_element_type=jnp.float32) + ba_ref[...]
    shortcut = res_a[:cout, :]                                   # (Cout, M)
    mid = res_a[cout:, :]                                        # (Cmid, M)

    # --- conv2( relu( BN_2(mid) ) ) + shortcut ------------------------------
    p0 = stash(bufb_ref, jnp.maximum(mid * sc2_ref[...] + bi2_ref[...], 0.0))
    build_im2col(bufb_ref, imb_ref, p0)
    out = jnp.dot(wb_ref[...], imb_ref[...].astype(jnp.bfloat16),
                  preferred_element_type=jnp.float32) + bb_ref[...] + shortcut

    o_ref[0] = out.astype(o_ref.dtype)                           # lane-dense


# -----------------------------------------------------------------------------
# Wrapper: NCHW in / NCHW out (free reshapes only, no transposes).
# -----------------------------------------------------------------------------
def _tap_masks(H, W):
    yy, xx = jnp.meshgrid(jnp.arange(H), jnp.arange(W), indexing="ij")
    rows = []
    for ky in range(3):
        for kx in range(3):
            valid = ((yy + ky - 1 >= 0) & (yy + ky - 1 < H) &
                     (xx + kx - 1 >= 0) & (xx + kx - 1 < W))
            rows.append(valid.reshape(-1))
    return jnp.stack(rows).astype(jnp.float32)          # (9, H*W)


def double_conv_forward(x_nchw, kp):
    N, Cin, H, W = x_nchw.shape
    M = H * W
    halo = 128
    assert W + 1 <= halo, "line-buffer halo too small for this W"

    cout_plus_cmid = kp["wa"].shape[0]
    Cout = kp["wb"].shape[0]
    Cmid = cout_plus_cmid - Cout

    x_flat = x_nchw.reshape(N, Cin, M)                  # free view
    masks = _tap_masks(H, W)

    kernel = functools.partial(_double_conv_kernel, W)

    def full(a):
        return pl.BlockSpec(a.shape, lambda n: (0,) * a.ndim)

    params = [masks,
              kp["sc_s"], kp["bi_s"], kp["sc1"], kp["bi1"], kp["wa"], kp["ba"],
              kp["sc2"], kp["bi2"], kp["wb"], kp["bb"]]

    y_flat = pl.pallas_call(
        kernel,
        out_shape=jax.ShapeDtypeStruct((N, Cout, M), x_nchw.dtype),
        grid_spec=pltpu.PrefetchScalarGridSpec(
            num_scalar_prefetch=0,
            grid=(N,),
            in_specs=[pl.BlockSpec((1, Cin, M), lambda n: (n, 0, 0))]
                     + [full(a) for a in params],
            out_specs=pl.BlockSpec((1, Cout, M), lambda n: (n, 0, 0)),
            scratch_shapes=[
                pltpu.VMEM((2 * Cin, M + 2 * halo), jnp.float32),  # line buf A
                pltpu.VMEM((Cmid, M + 2 * halo), jnp.float32),     # line buf B
                pltpu.VMEM((18 * Cin, M), jnp.float32),            # im2col A
                pltpu.VMEM((9 * Cmid, M), jnp.float32),            # im2col B
            ]),
        compiler_params=pltpu.CompilerParams(
            dimension_semantics=("parallel",)),
    )(x_flat, *params)

    return y_flat.reshape(N, Cout, H, W)                # free view


# -----------------------------------------------------------------------------
# Parameters: spectral norm + eval-mode BN folded; kernel-ready packing.
# -----------------------------------------------------------------------------
def _spectral_normalize(w, n_iter=30):
    # torch spectral_norm: divide by the largest singular value of the
    # (Cout, Cin*kh*kw) matricization (converged power iteration).
    mat = w.reshape(w.shape[0], -1)
    u = jnp.ones((mat.shape[0],), jnp.float32) / jnp.sqrt(float(mat.shape[0]))
    v = jnp.zeros((mat.shape[1],), jnp.float32)
    for _ in range(n_iter):
        v = mat.T @ u
        v = v / (jnp.linalg.norm(v) + 1e-12)
        u = mat @ v
        u = u / (jnp.linalg.norm(u) + 1e-12)
    sigma = u @ (mat @ v)
    return w / sigma


def init_params(key, in_ch, out_ch, mid_ch=None):
    if mid_ch is None:
        mid_ch = out_ch
    ks = jax.random.split(key, 6)

    def bn(k, c):
        k1, k2, k3, k4 = jax.random.split(k, 4)
        gamma = 1.0 + 0.1 * jax.random.normal(k1, (c,), jnp.float32)
        beta = 0.1 * jax.random.normal(k2, (c,), jnp.float32)
        mean = 0.1 * jax.random.normal(k3, (c,), jnp.float32)
        var = jnp.abs(1.0 + 0.1 * jax.random.normal(k4, (c,), jnp.float32))
        scale = gamma / jnp.sqrt(var + 1e-5)        # eval-mode fold
        bias = beta - mean * scale
        return scale, bias

    def conv(k, cin, cout):
        kw, kb = jax.random.split(k, 2)
        fan_in = cin * 9
        w = jax.random.normal(kw, (cout, cin, 3, 3), jnp.float32)
        w = _spectral_normalize(w / jnp.sqrt(float(fan_in)))
        b = jax.random.normal(kb, (cout,), jnp.float32) / jnp.sqrt(float(fan_in))
        return w, b

    sc_s, bi_s = bn(ks[0], in_ch)
    w_s, b_s = conv(ks[1], in_ch, out_ch)
    sc1, bi1 = bn(ks[2], in_ch)
    w1, b1 = conv(ks[3], in_ch, mid_ch)
    sc2, bi2 = bn(ks[4], mid_ch)
    w2, b2 = conv(ks[5], mid_ch, out_ch)
    return dict(sc_s=sc_s, bi_s=bi_s, w_s=w_s, b_s=b_s,
                sc1=sc1, bi1=bi1, w1=w1, b1=b1,
                sc2=sc2, bi2=bi2, w2=w2, b2=b2)


def pack_kernel_params(p):
    w_s, w1, w2 = p["w_s"], p["w1"], p["w2"]
    cout, cin = w_s.shape[0], w_s.shape[1]
    cmid = w1.shape[0]

    def taps(w):                       # (Co, Ci, 3, 3) -> (Co, 3, 3, Ci)
        return jnp.transpose(w, (0, 2, 3, 1))

    ws_t, w1_t, w2_t = taps(w_s), taps(w1), taps(w2)
    # Block-diagonal weight for the fused shortcut+conv1 matmul; column order
    # per tap is [BN_s(x) channels | relu(BN_1(x)) channels].
    top = jnp.concatenate([ws_t, jnp.zeros_like(ws_t)], axis=-1)
    bot = jnp.concatenate([jnp.zeros_like(w1_t), w1_t], axis=-1)
    wa = jnp.concatenate([top.reshape(cout, 9 * 2 * cin),
                          bot.reshape(cmid, 9 * 2 * cin)], axis=0)
    wb = w2_t.reshape(cout, 9 * cmid)

    def col(v):
        return v.reshape(-1, 1).astype(jnp.float32)

    return dict(
        sc_s=col(p["sc_s"]), bi_s=col(p["bi_s"]),
        sc1=col(p["sc1"]), bi1=col(p["bi1"]),
        sc2=col(p["sc2"]), bi2=col(p["bi2"]),
        wa=wa.astype(jnp.bfloat16), ba=col(jnp.concatenate([p["b_s"], p["b1"]])),
        wb=wb.astype(jnp.bfloat16), bb=col(p["b2"]),
    )


# -----------------------------------------------------------------------------
# Pure-JAX f32 reference (lax.conv) for correctness cross-check.
# -----------------------------------------------------------------------------
def double_conv_ref(x, p):
    def bn(x, scale, bias):
        return x * scale.reshape(1, -1, 1, 1) + bias.reshape(1, -1, 1, 1)

    def conv(x, w, b):
        y = lax.conv_general_dilated(
            x, w, window_strides=(1, 1), padding="SAME",
            dimension_numbers=("NCHW", "OIHW", "NCHW"))
        return y + b.reshape(1, -1, 1, 1)

    shortcut = conv(bn(x, p["sc_s"], p["bi_s"]), p["w_s"], p["b_s"])
    h = conv(jnp.maximum(bn(x, p["sc1"], p["bi1"]), 0.0), p["w1"], p["b1"])
    h = conv(jnp.maximum(bn(h, p["sc2"], p["bi2"]), 0.0), p["w2"], p["b2"])
    return h + shortcut


# -----------------------------------------------------------------------------
if __name__ == "__main__":
    key = jax.random.PRNGKey(0)
    kx, kp = jax.random.split(key)

    # DoubleConv(in_channels=8, out_channels=8)  (mid_channels defaults to out)
    N, Cin, H, W = 2, 8, 16, 16
    Cout = 8

    x = jax.random.normal(kx, (N, Cin, H, W), jnp.float32)
    params = init_params(kp, Cin, Cout)
    kparams = pack_kernel_params(params)

    y = double_conv_forward(x, kparams)
    y = jax.block_until_ready(y)

    y_ref = double_conv_ref(x, params)
    assert y.shape == (N, Cout, H, W), y.shape
    # Kernel uses bf16 MXU operands (f32 accumulation) vs. the pure-f32
    # reference, so the tolerance is loosened accordingly.
    max_err = float(jnp.max(jnp.abs(y - y_ref)))
    assert jnp.allclose(y, y_ref, atol=5e-2, rtol=5e-2), max_err

    print("KERNEL_OK")
</pallas_src>

<mosaic_0001>
module attributes {stable_mosaic.version = 11 : i64} {
  func.func @_double_conv_kernel(%arg0: i32, %arg1: memref<1x8x256xf32, #tpu.memory_space<vmem>>, %arg2: memref<9x256xf32, #tpu.memory_space<vmem>>, %arg3: memref<8x1xf32, #tpu.memory_space<vmem>>, %arg4: memref<8x1xf32, #tpu.memory_space<vmem>>, %arg5: memref<8x1xf32, #tpu.memory_space<vmem>>, %arg6: memref<8x1xf32, #tpu.memory_space<vmem>>, %arg7: memref<16x144xbf16, #tpu.memory_space<vmem>>, %arg8: memref<16x1xf32, #tpu.memory_space<vmem>>, %arg9: memref<8x1xf32, #tpu.memory_space<vmem>>, %arg10: memref<8x1xf32, #tpu.memory_space<vmem>>, %arg11: memref<8x72xbf16, #tpu.memory_space<vmem>>, %arg12: memref<8x1xf32, #tpu.memory_space<vmem>>, %arg13: memref<1x8x256xf32, #tpu.memory_space<vmem>>, %arg14: memref<16x512xf32, #tpu.memory_space<vmem>>, %arg15: memref<8x512xf32, #tpu.memory_space<vmem>>, %arg16: memref<144x256xf32, #tpu.memory_space<vmem>>, %arg17: memref<72x256xf32, #tpu.memory_space<vmem>>) attributes {dimension_semantics = [#tpu.dimension_semantics<parallel>], iteration_bounds = array<i64: 2>, scalar_prefetch = 0 : i64, scratch_operands = 4 : i64, tpu.core_type = #tpu.core_type<tc>, window_params = [{transform_indices = @transform_0, window_bounds = array<i64: 1, 8, 256>}, {pipeline_mode = #tpu.pipeline_mode<synchronous>, transform_indices = @transform_1, window_bounds = array<i64: 9, 256>}, {pipeline_mode = #tpu.pipeline_mode<synchronous>, transform_indices = @transform_2, window_bounds = array<i64: 8, 1>}, {pipeline_mode = #tpu.pipeline_mode<synchronous>, transform_indices = @transform_3, window_bounds = array<i64: 8, 1>}, {pipeline_mode = #tpu.pipeline_mode<synchronous>, transform_indices = @transform_4, window_bounds = array<i64: 8, 1>}, {pipeline_mode = #tpu.pipeline_mode<synchronous>, transform_indices = @transform_5, window_bounds = array<i64: 8, 1>}, {pipeline_mode = #tpu.pipeline_mode<synchronous>, transform_indices = @transform_6, window_bounds = array<i64: 16, 144>}, {pipeline_mode = #tpu.pipeline_mode<synchronous>, transform_indices = @transform_7, window_bounds = array<i64: 16, 1>}, {pipeline_mode = #tpu.pipeline_mode<synchronous>, transform_indices = @transform_8, window_bounds = array<i64: 8, 1>}, {pipeline_mode = #tpu.pipeline_mode<synchronous>, transform_indices = @transform_9, window_bounds = array<i64: 8, 1>}, {pipeline_mode = #tpu.pipeline_mode<synchronous>, transform_indices = @transform_10, window_bounds = array<i64: 8, 72>}, {pipeline_mode = #tpu.pipeline_mode<synchronous>, transform_indices = @transform_11, window_bounds = array<i64: 8, 1>}, {transform_indices = @transform_12, window_bounds = array<i64: 1, 8, 256>}]} {
    %c0 = arith.constant 0 : index
    %c0_0 = arith.constant 0 : index
    %c0_1 = arith.constant 0 : index
    %0 = vector.load %arg1[%c0, %c0_0, %c0_1] : memref<1x8x256xf32, #tpu.memory_space<vmem>>, vector<1x8x256xf32>
    %1 = vector.shape_cast %0 : vector<1x8x256xf32> to vector<8x256xf32>
    %c0_2 = arith.constant 0 : index
    %c0_3 = arith.constant 0 : index
    %2 = vector.load %arg3[%c0_2, %c0_3] : memref<8x1xf32, #tpu.memory_space<vmem>>, vector<8x1xf32>
    %3 = vector.broadcast %2 : vector<8x1xf32> to vector<8x256xf32>
    %4 = arith.mulf %1, %3 : vector<8x256xf32>
    %c0_4 = arith.constant 0 : index
    %c0_5 = arith.constant 0 : index
    %5 = vector.load %arg4[%c0_4, %c0_5] : memref<8x1xf32, #tpu.memory_space<vmem>>, vector<8x1xf32>
    %6 = vector.broadcast %5 : vector<8x1xf32> to vector<8x256xf32>
    %7 = arith.addf %4, %6 : vector<8x256xf32>
    %c0_6 = arith.constant 0 : index
    %c0_7 = arith.constant 0 : index
    %8 = vector.load %arg5[%c0_6, %c0_7] : memref<8x1xf32, #tpu.memory_space<vmem>>, vector<8x1xf32>
    %9 = vector.broadcast %8 : vector<8x1xf32> to vector<8x256xf32>
    %10 = arith.mulf %1, %9 : vector<8x256xf32>
    %c0_8 = arith.constant 0 : index
    %c0_9 = arith.constant 0 : index
    %11 = vector.load %arg6[%c0_8, %c0_9] : memref<8x1xf32, #tpu.memory_space<vmem>>, vector<8x1xf32>
    %12 = vector.broadcast %11 : vector<8x1xf32> to vector<8x256xf32>
    %13 = arith.addf %10, %12 : vector<8x256xf32>
    %cst = arith.constant 0.000000e+00 : f32
    %14 = vector.broadcast %cst : f32 to vector<8x256xf32>
    %15 = arith.maximumf %13, %14 : vector<8x256xf32>
    %16 = tpu.concatenate %7, %15 in 0 : vector<8x256xf32>, vector<8x256xf32> -> vector<16x256xf32>
    %cst_10 = arith.constant 0.000000e+00 : f32
    %17 = vector.broadcast %cst_10 : f32 to vector<16x128xf32>
    %18 = tpu.concatenate %17, %16, %17 in 1 : vector<16x128xf32>, vector<16x256xf32>, vector<16x128xf32> -> vector<16x512xf32>
    %c0_11 = arith.constant 0 : index
    %c0_12 = arith.constant 0 : index
    %19 = vector.load %arg14[%c0_11, %c0_12] : memref<16x512xf32, #tpu.memory_space<vmem>>, vector<16x512xf32>
    tpu.vector_store %arg14[%c0_11, %c0_12], %18 {strides = array<i32>} : memref<16x512xf32, #tpu.memory_space<vmem>>, vector<16x512xf32>,
    %c0_13 = arith.constant 0 : index
    %c111 = arith.constant 111 : index
    %20 = vector.load %arg14[%c0_13, %c111] : memref<16x512xf32, #tpu.memory_space<vmem>>, vector<16x256xf32>
    %c0_14 = arith.constant 0 : index
    %c0_15 = arith.constant 0 : index
    %21 = vector.load %arg2[%c0_14, %c0_15] : memref<9x256xf32, #tpu.memory_space<vmem>>, vector<1x256xf32>
    %22 = vector.broadcast %21 : vector<1x256xf32> to vector<16x256xf32>
    %23 = arith.mulf %20, %22 : vector<16x256xf32>
    %c0_16 = arith.constant 0 : index
    %c0_17 = arith.constant 0 : index
    %24 = vector.load %arg16[%c0_16, %c0_17] : memref<144x256xf32, #tpu.memory_space<vmem>>, vector<16x256xf32>
    tpu.vector_store %arg16[%c0_16, %c0_17], %23 {strides = array<i32>} : memref<144x256xf32, #tpu.memory_space<vmem>>, vector<16x256xf32>,
    %c0_18 = arith.constant 0 : index
    %c112 = arith.constant 112 : index
    %25 = vector.load %arg14[%c0_18, %c112] : memref<16x512xf32, #tpu.memory_space<vmem>>, vector<16x256xf32>
    %c1 = arith.constant 1 : index
    %c0_19 = arith.constant 0 : index
    %26 = vector.load %arg2[%c1, %c0_19] : memref<9x256xf32, #tpu.memory_space<vmem>>, vector<1x256xf32>
    %27 = vector.broadcast %26 : vector<1x256xf32> to vector<16x256xf32>
    %28 = arith.mulf %25, %27 : vector<16x256xf32>
    %c16 = arith.constant 16 : index
    %c0_20 = arith.constant 0 : index
    %29 = vector.load %arg16[%c16, %c0_20] : memref<144x256xf32, #tpu.memory_space<vmem>>, vector<16x256xf32>
    tpu.vector_store %arg16[%c16, %c0_20], %28 {strides = array<i32>} : memref<144x256xf32, #tpu.memory_space<vmem>>, vector<16x256xf32>,
    %c0_21 = arith.constant 0 : index
    %c113 = arith.constant 113 : index
    %30 = vector.load %arg14[%c0_21, %c113] : memref<16x512xf32, #tpu.memory_space<vmem>>, vector<16x256xf32>
    %c2 = arith.constant 2 : index
    %c0_22 = arith.constant 0 : index
    %31 = vector.load %arg2[%c2, %c0_22] : memref<9x256xf32, #tpu.memory_space<vmem>>, vector<1x256xf32>
    %32 = vector.broadcast %31 : vector<1x256xf32> to vector<16x256xf32>
    %33 = arith.mulf %30, %32 : vector<16x256xf32>
    %c32 = arith.constant 32 : index
    %c0_23 = arith.constant 0 : index
    %34 = vector.load %arg16[%c32, %c0_23] : memref<144x256xf32, #tpu.memory_space<vmem>>, vector<16x256xf32>
    tpu.vector_store %arg16[%c32, %c0_23], %33 {strides = array<i32>} : memref<144x256xf32, #tpu.memory_space<vmem>>, vector<16x256xf32>,
    %c0_24 = arith.constant 0 : index
    %c127 = arith.constant 127 : index
    %35 = vector.load %arg14[%c0_24, %c127] : memref<16x512xf32, #tpu.memory_space<vmem>>, vector<16x256xf32>
    %c3 = arith.constant 3 : index
    %c0_25 = arith.constant 0 : index
    %36 = vector.load %arg2[%c3, %c0_25] : memref<9x256xf32, #tpu.memory_space<vmem>>, vector<1x256xf32>
    %37 = vector.broadcast %36 : vector<1x256xf32> to vector<16x256xf32>
    %38 = arith.mulf %35, %37 : vector<16x256xf32>
    %c48 = arith.constant 48 : index
    %c0_26 = arith.constant 0 : index
    %39 = vector.load %arg16[%c48, %c0_26] : memref<144x256xf32, #tpu.memory_space<vmem>>, vector<16x256xf32>
    tpu.vector_store %arg16[%c48, %c0_26], %38 {strides = array<i32>} : memref<144x256xf32, #tpu.memory_space<vmem>>, vector<16x256xf32>,
    %c0_27 = arith.constant 0 : index
    %c128 = arith.constant 128 : index
    %40 = vector.load %arg14[%c0_27, %c128] : memref<16x512xf32, #tpu.memory_space<vmem>>, vector<16x256xf32>
    %c4 = arith.constant 4 : index
    %c0_28 = arith.constant 0 : index
    %41 = vector.load %arg2[%c4, %c0_28] : memref<9x256xf32, #tpu.memory_space<vmem>>, vector<1x256xf32>
    %42 = vector.broadcast %41 : vector<1x256xf32> to vector<16x256xf32>
    %43 = arith.mulf %40, %42 : vector<16x256xf32>
    %c64 = arith.constant 64 : index
    %c0_29 = arith.constant 0 : index
    %44 = vector.load %arg16[%c64, %c0_29] : memref<144x256xf32, #tpu.memory_space<vmem>>, vector<16x256xf32>
    tpu.vector_store %arg16[%c64, %c0_29], %43 {strides = array<i32>} : memref<144x256xf32, #tpu.memory_space<vmem>>, vector<16x256xf32>,
    %c0_30 = arith.constant 0 : index
    %c129 = arith.constant 129 : index
    %45 = vector.load %arg14[%c0_30, %c129] : memref<16x512xf32, #tpu.memory_space<vmem>>, vector<16x256xf32>
    %c5 = arith.constant 5 : index
    %c0_31 = arith.constant 0 : index
    %46 = vector.load %arg2[%c5, %c0_31] : memref<9x256xf32, #tpu.memory_space<vmem>>, vector<1x256xf32>
    %47 = vector.broadcast %46 : vector<1x256xf32> to vector<16x256xf32>
    %48 = arith.mulf %45, %47 : vector<16x256xf32>
    %c80 = arith.constant 80 : index
    %c0_32 = arith.constant 0 : index
    %49 = vector.load %arg16[%c80, %c0_32] : memref<144x256xf32, #tpu.memory_space<vmem>>, vector<16x256xf32>
    tpu.vector_store %arg16[%c80, %c0_32], %48 {strides = array<i32>} : memref<144x256xf32, #tpu.memory_space<vmem>>, vector<16x256xf32>,
    %c0_33 = arith.constant 0 : index
    %c143 = arith.constant 143 : index
    %50 = vector.load %arg14[%c0_33, %c143] : memref<16x512xf32, #tpu.memory_space<vmem>>, vector<16x256xf32>
    %c6 = arith.constant 6 : index
    %c0_34 = arith.constant 0 : index
    %51 = vector.load %arg2[%c6, %c0_34] : memref<9x256xf32, #tpu.memory_space<vmem>>, vector<1x256xf32>
    %52 = vector.broadcast %51 : vector<1x256xf32> to vector<16x256xf32>
    %53 = arith.mulf %50, %52 : vector<16x256xf32>
    %c96 = arith.constant 96 : index
    %c0_35 = arith.constant 0 : index
    %54 = vector.load %arg16[%c96, %c0_35] : memref<144x256xf32, #tpu.memory_space<vmem>>, vector<16x256xf32>
    tpu.vector_store %arg16[%c96, %c0_35], %53 {strides = array<i32>} : memref<144x256xf32, #tpu.memory_space<vmem>>, vector<16x256xf32>,
    %c0_36 = arith.constant 0 : index
    %c144 = arith.constant 144 : index
    %55 = vector.load %arg14[%c0_36, %c144] : memref<16x512xf32, #tpu.memory_space<vmem>>, vector<16x256xf32>
    %c7 = arith.constant 7 : index
    %c0_37 = arith.constant 0 : index
    %56 = vector.load %arg2[%c7, %c0_37] : memref<9x256xf32, #tpu.memory_space<vmem>>, vector<1x256xf32>
    %57 = vector.broadcast %56 : vector<1x256xf32> to vector<16x256xf32>
    %58 = arith.mulf %55, %57 : vector<16x256xf32>
    %c112_38 = arith.constant 112 : index
    %c0_39 = arith.constant 0 : index
    %59 = vector.load %arg16[%c112_38, %c0_39] : memref<144x256xf32, #tpu.memory_space<vmem>>, vector<16x256xf32>
    tpu.vector_store %arg16[%c112_38, %c0_39], %58 {strides = array<i32>} : memref<144x256xf32, #tpu.memory_space<vmem>>, vector<16x256xf32>,
    %c0_40 = arith.constant 0 : index
    %c145 = arith.constant 145 : index
    %60 = vector.load %arg14[%c0_40, %c145] : memref<16x512xf32, #tpu.memory_space<vmem>>, vector<16x256xf32>
    %c8 = arith.constant 8 : index
    %c0_41 = arith.constant 0 : index
    %61 = vector.load %arg2[%c8, %c0_41] : memref<9x256xf32, #tpu.memory_space<vmem>>, vector<1x256xf32>
    %62 = vector.broadcast %61 : vector<1x256xf32> to vector<16x256xf32>
    %63 = arith.mulf %60, %62 : vector<16x256xf32>
    %c128_42 = arith.constant 128 : index
    %c0_43 = arith.constant 0 : index
    %64 = vector.load %arg16[%c128_42, %c0_43] : memref<144x256xf32, #tpu.memory_space<vmem>>, vector<16x256xf32>
    tpu.vector_store %arg16[%c128_42, %c0_43], %63 {strides = array<i32>} : memref<144x256xf32, #tpu.memory_space<vmem>>, vector<16x256xf32>,
    %c0_44 = arith.constant 0 : index
    %c0_45 = arith.constant 0 : index
    %65 = vector.load %arg7[%c0_44, %c0_45] : memref<16x144xbf16, #tpu.memory_space<vmem>>, vector<16x144xbf16>
    %c0_46 = arith.constant 0 : index
    %c0_47 = arith.constant 0 : index
    %66 = vector.load %arg16[%c0_46, %c0_47] : memref<144x256xf32, #tpu.memory_space<vmem>>, vector<144x256xf32>
    %67 = arith.truncf %66 : vector<144x256xf32> to vector<144x256xbf16>
    %cst_48 = arith.constant dense<0.000000e+00> : vector<16x256xf32>
    %68 = tpu.matmul %65, %67, %cst_48 {dimension_numbers = #tpu.dot_dimension_numbers<[1], [0], [0], [1], [0, 0, 1, 1], [], []>} : vector<16x144xbf16>, vector<144x256xbf16>, vector<16x256xf32> -> vector<16x256xf32>
    %c0_49 = arith.constant 0 : index
    %c0_50 = arith.constant 0 : index
    %69 = vector.load %arg8[%c0_49, %c0_50] : memref<16x1xf32, #tpu.memory_space<vmem>>, vector<16x1xf32>
    %70 = vector.broadcast %69 : vector<16x1xf32> to vector<16x256xf32>
    %71 = arith.addf %68, %70 : vector<16x256xf32>
    %72 = vector.extract_strided_slice %71 {offsets = [0, 0], sizes = [8, 256], strides = [1, 1]} : vector<16x256xf32> to vector<8x256xf32>
    %73 = vector.extract_strided_slice %71 {offsets = [8, 0], sizes = [8, 256], strides = [1, 1]} : vector<16x256xf32> to vector<8x256xf32>
    %c0_51 = arith.constant 0 : index
    %c0_52 = arith.constant 0 : index
    %74 = vector.load %arg9[%c0_51, %c0_52] : memref<8x1xf32, #tpu.memory_space<vmem>>, vector<8x1xf32>
    %75 = vector.broadcast %74 : vector<8x1xf32> to vector<8x256xf32>
    %76 = arith.mulf %73, %75 : vector<8x256xf32>
    %c0_53 = arith.constant 0 : index
    %c0_54 = arith.constant 0 : index
    %77 = vector.load %arg10[%c0_53, %c0_54] : memref<8x1xf32, #tpu.memory_space<vmem>>, vector<8x1xf32>
    %78 = vector.broadcast %77 : vector<8x1xf32> to vector<8x256xf32>
    %79 = arith.addf %76, %78 : vector<8x256xf32>
    %cst_55 = arith.constant 0.000000e+00 : f32
    %80 = vector.broadcast %cst_55 : f32 to vector<8x256xf32>
    %81 = arith.maximumf %79, %80 : vector<8x256xf32>
    %cst_56 = arith.constant 0.000000e+00 : f32
    %82 = vector.broadcast %cst_56 : f32 to vector<8x128xf32>
    %83 = tpu.concatenate %82, %81, %82 in 1 : vector<8x128xf32>, vector<8x256xf32>, vector<8x128xf32> -> vector<8x512xf32>
    %c0_57 = arith.constant 0 : index
    %c0_58 = arith.constant 0 : index
    %84 = vector.load %arg15[%c0_57, %c0_58] : memref<8x512xf32, #tpu.memory_space<vmem>>, vector<8x512xf32>
    tpu.vector_store %arg15[%c0_57, %c0_58], %83 {strides = array<i32>} : memref<8x512xf32, #tpu.memory_space<vmem>>, vector<8x512xf32>,
    %c0_59 = arith.constant 0 : index
    %c111_60 = arith.constant 111 : index
    %85 = vector.load %arg15[%c0_59, %c111_60] : memref<8x512xf32, #tpu.memory_space<vmem>>, vector<8x256xf32>
    %c0_61 = arith.constant 0 : index
    %c0_62 = arith.constant 0 : index
    %86 = vector.load %arg2[%c0_61, %c0_62] : memref<9x256xf32, #tpu.memory_space<vmem>>, vector<1x256xf32>
    %87 = vector.broadcast %86 : vector<1x256xf32> to vector<8x256xf32>
    %88 = arith.mulf %85, %87 : vector<8x256xf32>
    %c0_63 = arith.constant 0 : index
    %c0_64 = arith.constant 0 : index
    %89 = vector.load %arg17[%c0_63, %c0_64] : memref<72x256xf32, #tpu.memory_space<vmem>>, vector<8x256xf32>
    tpu.vector_store %arg17[%c0_63, %c0_64], %88 {strides = array<i32>} : memref<72x256xf32, #tpu.memory_space<vmem>>, vector<8x256xf32>,
    %c0_65 = arith.constant 0 : index
    %c112_66 = arith.constant 112 : index
    %90 = vector.load %arg15[%c0_65, %c112_66] : memref<8x512xf32, #tpu.memory_space<vmem>>, vector<8x256xf32>
    %c1_67 = arith.constant 1 : index
    %c0_68 = arith.constant 0 : index
    %91 = vector.load %arg2[%c1_67, %c0_68] : memref<9x256xf32, #tpu.memory_space<vmem>>, vector<1x256xf32>
    %92 = vector.broadcast %91 : vector<1x256xf32> to vector<8x256xf32>
    %93 = arith.mulf %90, %92 : vector<8x256xf32>
    %c8_69 = arith.constant 8 : index
    %c0_70 = arith.constant 0 : index
    %94 = vector.load %arg17[%c8_69, %c0_70] : memref<72x256xf32, #tpu.memory_space<vmem>>, vector<8x256xf32>
    tpu.vector_store %arg17[%c8_69, %c0_70], %93 {strides = array<i32>} : memref<72x256xf32, #tpu.memory_space<vmem>>, vector<8x256xf32>,
    %c0_71 = arith.constant 0 : index
    %c113_72 = arith.constant 113 : index
    %95 = vector.load %arg15[%c0_71, %c113_72] : memref<8x512xf32, #tpu.memory_space<vmem>>, vector<8x256xf32>
    %c2_73 = arith.constant 2 : index
    %c0_74 = arith.constant 0 : index
    %96 = vector.load %arg2[%c2_73, %c0_74] : memref<9x256xf32, #tpu.memory_space<vmem>>, vector<1x256xf32>
    %97 = vector.broadcast %96 : vector<1x256xf32> to vector<8x256xf32>
    %98 = arith.mulf %95, %97 : vector<8x256xf32>
    %c16_75 = arith.constant 16 : index
    %c0_76 = arith.constant 0 : index
    %99 = vector.load %arg17[%c16_75, %c0_76] : memref<72x256xf32, #tpu.memory_space<vmem>>, vector<8x256xf32>
    tpu.vector_store %arg17[%c16_75, %c0_76], %98 {strides = array<i32>} : memref<72x256xf32, #tpu.memory_space<vmem>>, vector<8x256xf32>,
    %c0_77 = arith.constant 0 : index
    %c127_78 = arith.constant 127 : index
    %100 = vector.load %arg15[%c0_77, %c127_78] : memref<8x512xf32, #tpu.memory_space<vmem>>, vector<8x256xf32>
    %c3_79 = arith.constant 3 : index
    %c0_80 = arith.constant 0 : index
    %101 = vector.load %arg2[%c3_79, %c0_80] : memref<9x256xf32, #tpu.memory_space<vmem>>, vector<1x256xf32>
    %102 = vector.broadcast %101 : vector<1x256xf32> to vector<8x256xf32>
    %103 = arith.mulf %100, %102 : vector<8x256xf32>
    %c24 = arith.constant 24 : index
    %c0_81 = arith.constant 0 : index
    %104 = vector.load %arg17[%c24, %c0_81] : memref<72x256xf32, #tpu.memory_space<vmem>>, vector<8x256xf32>
    tpu.vector_store %arg17[%c24, %c0_81], %103 {strides = array<i32>} : memref<72x256xf32, #tpu.memory_space<vmem>>, vector<8x256xf32>,
    %c0_82 = arith.constant 0 : index
    %c128_83 = arith.constant 128 : index
    %105 = vector.load %arg15[%c0_82, %c128_83] : memref<8x512xf32, #tpu.memory_space<vmem>>, vector<8x256xf32>
    %c4_84 = arith.constant 4 : index
    %c0_85 = arith.constant 0 : index
    %106 = vector.load %arg2[%c4_84, %c0_85] : memref<9x256xf32, #tpu.memory_space<vmem>>, vector<1x256xf32>
    %107 = vector.broadcast %106 : vector<1x256xf32> to vector<8x256xf32>
    %108 = arith.mulf %105, %107 : vector<8x256xf32>
    %c32_86 = arith.constant 32 : index
    %c0_87 = arith.constant 0 : index
    %109 = vector.load %arg17[%c32_86, %c0_87] : memref<72x256xf32, #tpu.memory_space<vmem>>, vector<8x256xf32>
    tpu.vector_store %arg17[%c32_86, %c0_87], %108 {strides = array<i32>} : memref<72x256xf32, #tpu.memory_space<vmem>>, vector<8x256xf32>,
    %c0_88 = arith.constant 0 : index
    %c129_89 = arith.constant 129 : index
    %110 = vector.load %arg15[%c0_88, %c129_89] : memref<8x512xf32, #tpu.memory_space<vmem>>, vector<8x256xf32>
    %c5_90 = arith.constant 5 : index
    %c0_91 = arith.constant 0 : index
    %111 = vector.load %arg2[%c5_90, %c0_91] : memref<9x256xf32, #tpu.memory_space<vmem>>, vector<1x256xf32>
    %112 = vector.broadcast %111 : vector<1x256xf32> to vector<8x256xf32>
    %113 = arith.mulf %110, %112 : vector<8x256xf32>
    %c40 = arith.constant 40 : index
    %c0_92 = arith.constant 0 : index
    %114 = vector.load %arg17[%c40, %c0_92] : memref<72x256xf32, #tpu.memory_space<vmem>>, vector<8x256xf32>
    tpu.vector_store %arg17[%c40, %c0_92], %113 {strides = array<i32>} : memref<72x256xf32, #tpu.memory_space<vmem>>, vector<8x256xf32>,
    %c0_93 = arith.constant 0 : index
    %c143_94 = arith.constant 143 : index
    %115 = vector.load %arg15[%c0_93, %c143_94] : memref<8x512xf32, #tpu.memory_space<vmem>>, vector<8x256xf32>
    %c6_95 = arith.constant 6 : index
    %c0_96 = arith.constant 0 : index
    %116 = vector.load %arg2[%c6_95, %c0_96] : memref<9x256xf32, #tpu.memory_space<vmem>>, vector<1x256xf32>
    %117 = vector.broadcast %116 : vector<1x256xf32> to vector<8x256xf32>
    %118 = arith.mulf %115, %117 : vector<8x256xf32>
    %c48_97 = arith.constant 48 : index
    %c0_98 = arith.constant 0 : index
    %119 = vector.load %arg17[%c48_97, %c0_98] : memref<72x256xf32, #tpu.memory_space<vmem>>, vector<8x256xf32>
    tpu.vector_store %arg17[%c48_97, %c0_98], %118 {strides = array<i32>} : memref<72x256xf32, #tpu.memory_space<vmem>>, vector<8x256xf32>,
    %c0_99 = arith.constant 0 : index
    %c144_100 = arith.constant 144 : index
    %120 = vector.load %arg15[%c0_99, %c144_100] : memref<8x512xf32, #tpu.memory_space<vmem>>, vector<8x256xf32>
    %c7_101 = arith.constant 7 : index
    %c0_102 = arith.constant 0 : index
    %121 = vector.load %arg2[%c7_101, %c0_102] : memref<9x256xf32, #tpu.memory_space<vmem>>, vector<1x256xf32>
    %122 = vector.broadcast %121 : vector<1x256xf32> to vector<8x256xf32>
    %123 = arith.mulf %120, %122 : vector<8x256xf32>
    %c56 = arith.constant 56 : index
    %c0_103 = arith.constant 0 : index
    %124 = vector.load %arg17[%c56, %c0_103] : memref<72x256xf32, #tpu.memory_space<vmem>>, vector<8x256xf32>
    tpu.vector_store %arg17[%c56, %c0_103], %123 {strides = array<i32>} : memref<72x256xf32, #tpu.memory_space<vmem>>, vector<8x256xf32>,
    %c0_104 = arith.constant 0 : index
    %c145_105 = arith.constant 145 : index
    %125 = vector.load %arg15[%c0_104, %c145_105] : memref<8x512xf32, #tpu.memory_space<vmem>>, vector<8x256xf32>
    %c8_106 = arith.constant 8 : index
    %c0_107 = arith.constant 0 : index
    %126 = vector.load %arg2[%c8_106, %c0_107] : memref<9x256xf32, #tpu.memory_space<vmem>>, vector<1x256xf32>
    %127 = vector.broadcast %126 : vector<1x256xf32> to vector<8x256xf32>
    %128 = arith.mulf %125, %127 : vector<8x256xf32>
    %c64_108 = arith.constant 64 : index
    %c0_109 = arith.constant 0 : index
    %129 = vector.load %arg17[%c64_108, %c0_109] : memref<72x256xf32, #tpu.memory_space<vmem>>, vector<8x256xf32>
    tpu.vector_store %arg17[%c64_108, %c0_109], %128 {strides = array<i32>} : memref<72x256xf32, #tpu.memory_space<vmem>>, vector<8x256xf32>,
    %c0_110 = arith.constant 0 : index
    %c0_111 = arith.constant 0 : index
    %130 = vector.load %arg11[%c0_110, %c0_111] : memref<8x72xbf16, #tpu.memory_space<vmem>>, vector<8x72xbf16>
    %c0_112 = arith.constant 0 : index
    %c0_113 = arith.constant 0 : index
    %131 = vector.load %arg17[%c0_112, %c0_113] : memref<72x256xf32, #tpu.memory_space<vmem>>, vector<72x256xf32>
    %132 = arith.truncf %131 : vector<72x256xf32> to vector<72x256xbf16>
    %cst_114 = arith.constant dense<0.000000e+00> : vector<8x256xf32>
    %133 = tpu.matmul %130, %132, %cst_114 {dimension_numbers = #tpu.dot_dimension_numbers<[1], [0], [0], [1], [0, 0, 1, 1], [], []>} : vector<8x72xbf16>, vector<72x256xbf16>, vector<8x256xf32> -> vector<8x256xf32>
    %c0_115 = arith.constant 0 : index
    %c0_116 = arith.constant 0 : index
    %134 = vector.load %arg12[%c0_115, %c0_116] : memref<8x1xf32, #tpu.memory_space<vmem>>, vector<8x1xf32>
    %135 = vector.broadcast %134 : vector<8x1xf32> to vector<8x256xf32>
    %136 = arith.addf %133, %135 : vector<8x256xf32>
    %137 = arith.addf %136, %72 : vector<8x256xf32>
    %c0_117 = arith.constant 0 : index
    %c0_118 = arith.constant 0 : index
    %c0_119 = arith.constant 0 : index
    %138 = vector.load %arg13[%c0_117, %c0_118, %c0_119] : memref<1x8x256xf32, #tpu.memory_space<vmem>>, vector<1x8x256xf32>
    %139 = vector.shape_cast %138 : vector<1x8x256xf32> to vector<8x256xf32>
    %140 = vector.shape_cast %137 : vector<8x256xf32> to vector<1x8x256xf32>
    tpu.vector_store %arg13[%c0_117, %c0_118, %c0_119], %140 {strides = array<i32>} : memref<1x8x256xf32, #tpu.memory_space<vmem>>, vector<1x8x256xf32>,
    return
  }
  func.func @transform_0(%arg0: i32) -> (i32, i32, i32) {
    %c0_i32 = arith.constant 0 : i32
    %c0_i32_0 = arith.constant 0 : i32
    %c0_i32_1 = arith.constant 0 : i32
    return %arg0, %c0_i32, %c0_i32_0 : i32, i32, i32
  }
  func.func @transform_1(%arg0: i32) -> (i32, i32) {
    %c0_i32 = arith.constant 0 : i32
    %c0_i32_0 = arith.constant 0 : i32
    %c0_i32_1 = arith.constant 0 : i32
    return %c0_i32, %c0_i32_0 : i32, i32
  }
  func.func @transform_2(%arg0: i32) -> (i32, i32) {
    %c0_i32 = arith.constant 0 : i32
    %c0_i32_0 = arith.constant 0 : i32
    %c0_i32_1 = arith.constant 0 : i32
    return %c0_i32, %c0_i32_0 : i32, i32
  }
  func.func @transform_3(%arg0: i32) -> (i32, i32) {
    %c0_i32 = arith.constant 0 : i32
    %c0_i32_0 = arith.constant 0 : i32
    %c0_i32_1 = arith.constant 0 : i32
    return %c0_i32, %c0_i32_0 : i32, i32
  }
  func.func @transform_4(%arg0: i32) -> (i32, i32) {
    %c0_i32 = arith.constant 0 : i32
    %c0_i32_0 = arith.constant 0 : i32
    %c0_i32_1 = arith.constant 0 : i32
    return %c0_i32, %c0_i32_0 : i32, i32
  }
  func.func @transform_5(%arg0: i32) -> (i32, i32) {
    %c0_i32 = arith.constant 0 : i32
    %c0_i32_0 = arith.constant 0 : i32
    %c0_i32_1 = arith.constant 0 : i32
    return %c0_i32, %c0_i32_0 : i32, i32
  }
  func.func @transform_6(%arg0: i32) -> (i32, i32) {
    %c0_i32 = arith.constant 0 : i32
    %c0_i32_0 = arith.constant 0 : i32
    %c0_i32_1 = arith.constant 0 : i32
    return %c0_i32, %c0_i32_0 : i32, i32
  }
  func.func @transform_7(%arg0: i32) -> (i32, i32) {
    %c0_i32 = arith.constant 0 : i32
    %c0_i32_0 = arith.constant 0 : i32
    %c0_i32_1 = arith.constant 0 : i32
    return %c0_i32, %c0_i32_0 : i32, i32
  }
  func.func @transform_8(%arg0: i32) -> (i32, i32) {
    %c0_i32 = arith.constant 0 : i32
    %c0_i32_0 = arith.constant 0 : i32
    %c0_i32_1 = arith.constant 0 : i32
    return %c0_i32, %c0_i32_0 : i32, i32
  }
  func.func @transform_9(%arg0: i32) -> (i32, i32) {
    %c0_i32 = arith.constant 0 : i32
    %c0_i32_0 = arith.constant 0 : i32
    %c0_i32_1 = arith.constant 0 : i32
    return %c0_i32, %c0_i32_0 : i32, i32
  }
  func.func @transform_10(%arg0: i32) -> (i32, i32) {
    %c0_i32 = arith.constant 0 : i32
    %c0_i32_0 = arith.constant 0 : i32
    %c0_i32_1 = arith.constant 0 : i32
    return %c0_i32, %c0_i32_0 : i32, i32
  }
  func.func @transform_11(%arg0: i32) -> (i32, i32) {
    %c0_i32 = arith.constant 0 : i32
    %c0_i32_0 = arith.constant 0 : i32
    %c0_i32_1 = arith.constant 0 : i32
    return %c0_i32, %c0_i32_0 : i32, i32
  }
  func.func @transform_12(%arg0: i32) -> (i32, i32, i32) {
    %c0_i32 = arith.constant 0 : i32
    %c0_i32_0 = arith.constant 0 : i32
    %c0_i32_1 = arith.constant 0 : i32
    return %arg0, %c0_i32, %c0_i32_0 : i32, i32, i32
  }
}

</mosaic_0001>

<llo_original>
// kernel: tpu_custom_call.1
$region0: #{tpu_custom_call.1}
  #allocation0 [shape = 'u32[]', space=smem, size = 0x4, offset = 0x4, fixed_abs, tag = 'smem constant byte address 0x4 - core index']
  #allocation1 [shape = 'u32[144,128]{1,0:T(1,128)}', space=vmem, size = 0x12000, scoped, tag = 'internal scratch']
  #allocation2 [shape = 'f32[16,512]{1,0:T(8,128)}', space=vmem, size = 0x8000, scoped, tag = 'scratch operand']
  #allocation3 [shape = 'f32[8,512]{1,0:T(8,128)}', space=vmem, size = 0x4000, scoped, tag = 'scratch operand']
  #allocation4 [shape = 'f32[144,256]{1,0:T(8,128)}', space=vmem, size = 0x24000, scoped, tag = 'scratch operand']
  #allocation5 [shape = 'f32[72,256]{1,0:T(8,128)}', space=vmem, size = 0x12000, scoped, tag = 'scratch operand']
  %s0 = inlined_call_operand.vmem [shape: f32[2,8,256], index: 0, kind: input, shape index: {}]
  %s1 = inlined_call_operand.vmem [shape: f32[9,256], index: 1, kind: input, shape index: {}]
  %s2 = inlined_call_operand.vmem [shape: f32[8,1], index: 2, kind: input, shape index: {}]
  %s3 = inlined_call_operand.vmem [shape: f32[8,1], index: 3, kind: input, shape index: {}]
  %s4 = inlined_call_operand.vmem [shape: f32[8,1], index: 4, kind: input, shape index: {}]
  %s5 = inlined_call_operand.vmem [shape: f32[8,1], index: 5, kind: input, shape index: {}]
  %s6 = inlined_call_operand.vmem [shape: bf16[16,144], index: 6, kind: input, shape index: {}]
  %s7 = inlined_call_operand.vmem [shape: f32[16,1], index: 7, kind: input, shape index: {}]
  %s8 = inlined_call_operand.vmem [shape: f32[8,1], index: 8, kind: input, shape index: {}]
  %s9 = inlined_call_operand.vmem [shape: f32[8,1], index: 9, kind: input, shape index: {}]
  %s10 = inlined_call_operand.vmem [shape: bf16[8,72], index: 10, kind: input, shape index: {}]
  %s11 = inlined_call_operand.vmem [shape: f32[8,1], index: 11, kind: input, shape index: {}]
  %s12 = inlined_call_operand.hbm [shape: f32[2,8,256], index: 12, kind: output, shape index: {}]
  %s13 = sld [smem:[#allocation0]]
  $region81: #{tpu_custom_call.1} parent=0
    _
  %s15 = ssub.s32 1, %s13
  %s16 = scalar_select 0, %s15, %s13
  $region1: #{tpu_custom_call.1} parent=0
    #allocation6 [shape = 'u8[16384]{0}', space=vmem, size = 0x4000, scoped, tag = 'output window, operand 0']
    #allocation7 [shape = 's32[2]{0}', space=sflag, size = 0x8, scoped, tag = 'scoped memory for tpu_custom_call.1']
    %17 = vsyncpa [#allocation7], 0
    %s18 = scalar_lea.sflag [#allocation7], 1
    %19 = vsyncpa %s18, 0
    loop: start=0, step=1, limit=4
    $region2: #{tpu_custom_call.1} parent=1 // loop_pre_header
      _
    $region3: #{tpu_custom_call.1} parent=1 // loop_header
      %s21 = sphi 0, %s25
      %p22 = scmp.ge.s32.totalorder %s21, 4
      %s31 = sphi 0, %s33
      %s34 = sphi 0, %s31
      %s35 = sphi 0, %s34
      %s51 = sphi 0, %s35
      %s55 = sphi 0, %s55
      %s57 = sphi 0, %s55
      %s58 = sphi 0, %s57
      %s72 = sphi 0, %s58
      %s76 = sphi 0, %s76
      %s78 = sphi 0, %s76
      %s79 = sphi 0, %s78
      %s93 = sphi 0, %s79
      %s97 = sphi 0, %s97
      %s99 = sphi 0, %s97
      %s100 = sphi 0, %s99
      %s114 = sphi 0, %s100
      %s118 = sphi 0, %s118
      %s120 = sphi 0, %s118
      %s121 = sphi 0, %s120
      %s135 = sphi 0, %s121
      %s139 = sphi 0, %s139
      %s141 = sphi 0, %s139
      %s142 = sphi 0, %s141
      %s156 = sphi 0, %s142
      %s160 = sphi 0, %s160
      %s162 = sphi 0, %s160
      %s163 = sphi 0, %s162
      %s177 = sphi 0, %s163
      %s181 = sphi 0, %s181
      %s183 = sphi 0, %s181
      %s184 = sphi 0, %s183
      %s198 = sphi 0, %s184
      %s202 = sphi 0, %s202
      %s204 = sphi 0, %s202
      %s205 = sphi 0, %s204
      %s219 = sphi 0, %s205
      %s223 = sphi 0, %s223
      %s225 = sphi 0, %s223
      %s226 = sphi 0, %s225
      %s240 = sphi 0, %s226
      %s244 = sphi 0, %s244
      %s246 = sphi 0, %s244
      %s247 = sphi 0, %s246
      %s261 = sphi 0, %s247
      %s265 = sphi 0, %s265
      %s267 = sphi 0, %s265
      %s268 = sphi 0, %s267
      %s282 = sphi 0, %s268
      %s288 = sphi 0, %s290
      %s291 = sphi 0, %s288
      %s292 = sphi 0, %s291
      %s308 = sphi 0, %s292
    $region4: #{tpu_custom_call.1} parent=1 // loop_header_branch
      %24 = sbr.rel (%p22) target = $region8
    $region5: #{tpu_custom_call.1} parent=1 // loop_body
      %s26 = ssub.s32 %s21, 1
      %s27 = ssub.s32 %s21, 2
      %s28 = sadd.s32 %s21, 1
      %s29 = ssub.s32 %s21, %s28
      %p30 = scmp.eq.s32.totalorder %s29, 0
      %s32 = sadd.s32 %s31, 1
      %s33 = scalar_select %p30, %s31, %s32
      %p36 = pneg %p30
      %p37 = scmp.eq.s32.totalorder %s21, 1
      %p38 = por %p36, %p37
      %p39 = scmp.ne.s32.totalorder %s31, %s34
      %p40 = scmp.eq.s32.totalorder %s21, 0
      %p41 = por %p39, %p40
      %p42 = scmp.ne.s32.totalorder %s31, %s34
      %p43 = scmp.eq.s32.totalorder %s26, 1
      %p44 = por %p42, %p43
      %p45 = scmp.ne.s32.totalorder %s34, %s35
      %p46 = scmp.eq.s32.totalorder %s26, 0
      %p47 = por %p45, %p46
      %p48 = scmp.ne.s32.totalorder %s34, %s35
      %p49 = scmp.eq.s32.totalorder %s27, 1
      %p50 = por %p48, %p49
      %p52 = scmp.ne.s32.totalorder %s35, %s51
      %p53 = scmp.eq.s32.totalorder %s27, 0
      %p54 = por %p52, %p53
      %s56 = sadd.s32 %s55, 1
      %p59 = scmp.eq.s32.totalorder %s21, 1
      %p60 = scmp.ne.s32.totalorder %s55, %s57
      %p61 = scmp.eq.s32.totalorder %s21, 0
      %p62 = por %p60, %p61
      %p63 = scmp.ne.s32.totalorder %s55, %s57
      %p64 = scmp.eq.s32.totalorder %s26, 1
      %p65 = por %p63, %p64
      %p66 = scmp.ne.s32.totalorder %s57, %s58
      %p67 = scmp.eq.s32.totalorder %s26, 0
      %p68 = por %p66, %p67
      %p69 = scmp.ne.s32.totalorder %s57, %s58
      %p70 = scmp.eq.s32.totalorder %s27, 1
      %p71 = por %p69, %p70
      %p73 = scmp.ne.s32.totalorder %s58, %s72
      %p74 = scmp.eq.s32.totalorder %s27, 0
      %p75 = por %p73, %p74
      %s77 = sadd.s32 %s76, 1
      %p80 = scmp.eq.s32.totalorder %s21, 1
      %p81 = scmp.ne.s32.totalorder %s76, %s78
      %p82 = scmp.eq.s32.totalorder %s21, 0
      %p83 = por %p81, %p82
      %p84 = scmp.ne.s32.totalorder %s76, %s78
      %p85 = scmp.eq.s32.totalorder %s26, 1
      %p86 = por %p84, %p85
      %p87 = scmp.ne.s32.totalorder %s78, %s79
      %p88 = scmp.eq.s32.totalorder %s26, 0
      %p89 = por %p87, %p88
      %p90 = scmp.ne.s32.totalorder %s78, %s79
      %p91 = scmp.eq.s32.totalorder %s27, 1
      %p92 = por %p90, %p91
      %p94 = scmp.ne.s32.totalorder %s79, %s93
      %p95 = scmp.eq.s32.totalorder %s27, 0
      %p96 = por %p94, %p95
      %s98 = sadd.s32 %s97, 1
      %p101 = scmp.eq.s32.totalorder %s21, 1
      %p102 = scmp.ne.s32.totalorder %s97, %s99
      %p103 = scmp.eq.s32.totalorder %s21, 0
      %p104 = por %p102, %p103
      %p105 = scmp.ne.s32.totalorder %s97, %s99
      %p106 = scmp.eq.s32.totalorder %s26, 1
      %p107 = por %p105, %p106
      %p108 = scmp.ne.s32.totalorder %s99, %s100
      %p109 = scmp.eq.s32.totalorder %s26, 0
      %p110 = por %p108, %p109
      %p111 = scmp.ne.s32.totalorder %s99, %s100
      %p112 = scmp.eq.s32.totalorder %s27, 1
      %p113 = por %p111, %p112
      %p115 = scmp.ne.s32.totalorder %s100, %s114
      %p116 = scmp.eq.s32.totalorder %s27, 0
      %p117 = por %p115, %p116
      %s119 = sadd.s32 %s118, 1
      %p122 = scmp.eq.s32.totalorder %s21, 1
      %p123 = scmp.ne.s32.totalorder %s118, %s120
      %p124 = scmp.eq.s32.totalorder %s21, 0
      %p125 = por %p123, %p124
      %p126 = scmp.ne.s32.totalorder %s118, %s120
      %p127 = scmp.eq.s32.totalorder %s26, 1
      %p128 = por %p126, %p127
      %p129 = scmp.ne.s32.totalorder %s120, %s121
      %p130 = scmp.eq.s32.totalorder %s26, 0
      %p131 = por %p129, %p130
      %p132 = scmp.ne.s32.totalorder %s120, %s121
      %p133 = scmp.eq.s32.totalorder %s27, 1
      %p134 = por %p132, %p133
      %p136 = scmp.ne.s32.totalorder %s121, %s135
      %p137 = scmp.eq.s32.totalorder %s27, 0
      %p138 = por %p136, %p137
      %s140 = sadd.s32 %s139, 1
      %p143 = scmp.eq.s32.totalorder %s21, 1
      %p144 = scmp.ne.s32.totalorder %s139, %s141
      %p145 = scmp.eq.s32.totalorder %s21, 0
      %p146 = por %p144, %p145
      %p147 = scmp.ne.s32.totalorder %s139, %s141
      %p148 = scmp.eq.s32.totalorder %s26, 1
      %p149 = por %p147, %p148
      %p150 = scmp.ne.s32.totalorder %s141, %s142
      %p151 = scmp.eq.s32.totalorder %s26, 0
      %p152 = por %p150, %p151
      %p153 = scmp.ne.s32.totalorder %s141, %s142
      %p154 = scmp.eq.s32.totalorder %s27, 1
      %p155 = por %p153, %p154
      %p157 = scmp.ne.s32.totalorder %s142, %s156
      %p158 = scmp.eq.s32.totalorder %s27, 0
      %p159 = por %p157, %p158
      %s161 = sadd.s32 %s160, 1
      %p164 = scmp.eq.s32.totalorder %s21, 1
      %p165 = scmp.ne.s32.totalorder %s160, %s162
      %p166 = scmp.eq.s32.totalorder %s21, 0
      %p167 = por %p165, %p166
      %p168 = scmp.ne.s32.totalorder %s160, %s162
      %p169 = scmp.eq.s32.totalorder %s26, 1
      %p170 = por %p168, %p169
      %p171 = scmp.ne.s32.totalorder %s162, %s163
      %p172 = scmp.eq.s32.totalorder %s26, 0
      %p173 = por %p171, %p172
      %p174 = scmp.ne.s32.totalorder %s162, %s163
      %p175 = scmp.eq.s32.totalorder %s27, 1
      %p176 = por %p174, %p175
      %p178 = scmp.ne.s32.totalorder %s163, %s177
      %p179 = scmp.eq.s32.totalorder %s27, 0
      %p180 = por %p178, %p179
      %s182 = sadd.s32 %s181, 1
      %p185 = scmp.eq.s32.totalorder %s21, 1
      %p186 = scmp.ne.s32.totalorder %s181, %s183
      %p187 = scmp.eq.s32.totalorder %s21, 0
      %p188 = por %p186, %p187
      %p189 = scmp.ne.s32.totalorder %s181, %s183
      %p190 = scmp.eq.s32.totalorder %s26, 1
      %p191 = por %p189, %p190
      %p192 = scmp.ne.s32.totalorder %s183, %s184
      %p193 = scmp.eq.s32.totalorder %s26, 0
      %p194 = por %p192, %p193
      %p195 = scmp.ne.s32.totalorder %s183, %s184
      %p196 = scmp.eq.s32.totalorder %s27, 1
      %p197 = por %p195, %p196
      %p199 = scmp.ne.s32.totalorder %s184, %s198
      %p200 = scmp.eq.s32.totalorder %s27, 0
      %p201 = por %p199, %p200
      %s203 = sadd.s32 %s202, 1
      %p206 = scmp.eq.s32.totalorder %s21, 1
      %p207 = scmp.ne.s32.totalorder %s202, %s204
      %p208 = scmp.eq.s32.totalorder %s21, 0
      %p209 = por %p207, %p208
      %p210 = scmp.ne.s32.totalorder %s202, %s204
      %p211 = scmp.eq.s32.totalorder %s26, 1
      %p212 = por %p210, %p211
      %p213 = scmp.ne.s32.totalorder %s204, %s205
      %p214 = scmp.eq.s32.totalorder %s26, 0
      %p215 = por %p213, %p214
      %p216 = scmp.ne.s32.totalorder %s204, %s205
      %p217 = scmp.eq.s32.totalorder %s27, 1
      %p218 = por %p216, %p217
      %p220 = scmp.ne.s32.totalorder %s205, %s219
      %p221 = scmp.eq.s32.totalorder %s27, 0
      %p222 = por %p220, %p221
      %s224 = sadd.s32 %s223, 1
      %p227 = scmp.eq.s32.totalorder %s21, 1
      %p228 = scmp.ne.s32.totalorder %s223, %s225
      %p229 = scmp.eq.s32.totalorder %s21, 0
      %p230 = por %p228, %p229
      %p231 = scmp.ne.s32.totalorder %s223, %s225
      %p232 = scmp.eq.s32.totalorder %s26, 1
      %p233 = por %p231, %p232
      %p234 = scmp.ne.s32.totalorder %s225, %s226
      %p235 = scmp.eq.s32.totalorder %s26, 0
      %p236 = por %p234, %p235
      %p237 = scmp.ne.s32.totalorder %s225, %s226
      %p238 = scmp.eq.s32.totalorder %s27, 1
      %p239 = por %p237, %p238
      %p241 = scmp.ne.s32.totalorder %s226, %s240
      %p242 = scmp.eq.s32.totalorder %s27, 0
      %p243 = por %p241, %p242
      %s245 = sadd.s32 %s244, 1
      %p248 = scmp.eq.s32.totalorder %s21, 1
      %p249 = scmp.ne.s32.totalorder %s244, %s246
      %p250 = scmp.eq.s32.totalorder %s21, 0
      %p251 = por %p249, %p250
      %p252 = scmp.ne.s32.totalorder %s244, %s246
      %p253 = scmp.eq.s32.totalorder %s26, 1
      %p254 = por %p252, %p253
      %p255 = scmp.ne.s32.totalorder %s246, %s247
      %p256 = scmp.eq.s32.totalorder %s26, 0
      %p257 = por %p255, %p256
      %p258 = scmp.ne.s32.totalorder %s246, %s247
      %p259 = scmp.eq.s32.totalorder %s27, 1
      %p260 = por %p258, %p259
      %p262 = scmp.ne.s32.totalorder %s247, %s261
      %p263 = scmp.eq.s32.totalorder %s27, 0
      %p264 = por %p262, %p263
      %s266 = sadd.s32 %s265, 1
      %p269 = scmp.eq.s32.totalorder %s21, 1
      %p270 = scmp.ne.s32.totalorder %s265, %s267
      %p271 = scmp.eq.s32.totalorder %s21, 0
      %p272 = por %p270, %p271
      %p273 = scmp.ne.s32.totalorder %s265, %s267
      %p274 = scmp.eq.s32.totalorder %s26, 1
      %p275 = por %p273, %p274
      %p276 = scmp.ne.s32.totalorder %s267, %s268
      %p277 = scmp.eq.s32.totalorder %s26, 0
      %p278 = por %p276, %p277
      %p279 = scmp.ne.s32.totalorder %s267, %s268
      %p280 = scmp.eq.s32.totalorder %s27, 1
      %p281 = por %p279, %p280
      %p283 = scmp.ne.s32.totalorder %s268, %s282
      %p284 = scmp.eq.s32.totalorder %s27, 0
      %p285 = por %p283, %p284
      %s286 = ssub.s32 %s21, %s28
      %p287 = scmp.eq.s32.totalorder %s286, 0
      %s289 = sadd.s32 %s288, 1
      %s290 = scalar_select %p287, %s288, %s289
      %p293 = pneg %p287
      %p294 = scmp.eq.s32.totalorder %s21, 1
      %p295 = por %p293, %p294
      %p296 = scmp.ne.s32.totalorder %s288, %s291
      %p297 = scmp.eq.s32.totalorder %s21, 0
      %p298 = por %p296, %p297
      %p299 = scmp.ne.s32.totalorder %s288, %s291
      %p300 = scmp.eq.s32.totalorder %s26, 1
      %p301 = por %p299, %p300
      %p302 = scmp.ne.s32.totalorder %s291, %s292
      %p303 = scmp.eq.s32.totalorder %s26, 0
      %p304 = por %p302, %p303
      %p305 = scmp.ne.s32.totalorder %s291, %s292
      %p306 = scmp.eq.s32.totalorder %s27, 1
      %p307 = por %p305, %p306
      %p309 = scmp.ne.s32.totalorder %s292, %s308
      %p310 = scmp.eq.s32.totalorder %s27, 0
      %p311 = por %p309, %p310
      %p312 = scmp.le.s32.totalorder 1, %s21
      %p313 = scmp.lt.s32.totalorder %s21, 3
      %p314 = pnand %p312, %p313
      %p315 = pneg %p314
      // Predicated region
      $region9: #{tpu_custom_call.1} parent=5 // pred_check
        _
      $region10: #{tpu_custom_call.1} parent=5 // pred_check_branch
        %317 = sbr.rel (%p314) target = $region12
      $region11: #{tpu_custom_call.1} parent=5 // pred_region
        %s318 = ssub.s32 %s21, 1
        // Predicated region
        $region13: #{tpu_custom_call.1} parent=11 // pred_check
          %p319 = pneg %p68
        $region14: #{tpu_custom_call.1} parent=11 // pred_check_branch
          %321 = sbr.rel (%p319) target = $region16
        $region15: #{tpu_custom_call.1} parent=11 // pred_region
          _
        $region16: #{tpu_custom_call.1} parent=11 // pred_fallthru
          _
        // Predicated region
        $region17: #{tpu_custom_call.1} parent=11 // pred_check
          %p322 = pneg %p89
        $region18: #{tpu_custom_call.1} parent=11 // pred_check_branch
          %324 = sbr.rel (%p322) target = $region20
        $region19: #{tpu_custom_call.1} parent=11 // pred_region
          _
        $region20: #{tpu_custom_call.1} parent=11 // pred_fallthru
          _
        // Predicated region
        $region21: #{tpu_custom_call.1} parent=11 // pred_check
          %p325 = pneg %p110
        $region22: #{tpu_custom_call.1} parent=11 // pred_check_branch
          %327 = sbr.rel (%p325) target = $region24
        $region23: #{tpu_custom_call.1} parent=11 // pred_region
          _
        $region24: #{tpu_custom_call.1} parent=11 // pred_fallthru
          _
        // Predicated region
        $region25: #{tpu_custom_call.1} parent=11 // pred_check
          %p328 = pneg %p131
        $region26: #{tpu_custom_call.1} parent=11 // pred_check_branch
          %330 = sbr.rel (%p328) target = $region28
        $region27: #{tpu_custom_call.1} parent=11 // pred_region
          _
        $region28: #{tpu_custom_call.1} parent=11 // pred_fallthru
          _
        // Predicated region
        $region29: #{tpu_custom_call.1} parent=11 // pred_check
          %p331 = pneg %p152
        $region30: #{tpu_custom_call.1} parent=11 // pred_check_branch
          %333 = sbr.rel (%p331) target = $region32
        $region31: #{tpu_custom_call.1} parent=11 // pred_region
          _
        $region32: #{tpu_custom_call.1} parent=11 // pred_fallthru
          _
        // Predicated region
        $region33: #{tpu_custom_call.1} parent=11 // pred_check
          %p334 = pneg %p173
        $region34: #{tpu_custom_call.1} parent=11 // pred_check_branch
          %336 = sbr.rel (%p334) target = $region36
        $region35: #{tpu_custom_call.1} parent=11 // pred_region
          _
        $region36: #{tpu_custom_call.1} parent=11 // pred_fallthru
          _
        // Predicated region
        $region37: #{tpu_custom_call.1} parent=11 // pred_check
          %p337 = pneg %p194
        $region38: #{tpu_custom_call.1} parent=11 // pred_check_branch
          %339 = sbr.rel (%p337) target = $region40
        $region39: #{tpu_custom_call.1} parent=11 // pred_region
          _
        $region40: #{tpu_custom_call.1} parent=11 // pred_fallthru
          _
        // Predicated region
        $region41: #{tpu_custom_call.1} parent=11 // pred_check
          %p340 = pneg %p215
        $region42: #{tpu_custom_call.1} parent=11 // pred_check_branch
          %342 = sbr.rel (%p340) target = $region44
        $region43: #{tpu_custom_call.1} parent=11 // pred_region
          _
        $region44: #{tpu_custom_call.1} parent=11 // pred_fallthru
          _
        // Predicated region
        $region45: #{tpu_custom_call.1} parent=11 // pred_check
          %p343 = pneg %p236
        $region46: #{tpu_custom_call.1} parent=11 // pred_check_branch
          %345 = sbr.rel (%p343) target = $region48
        $region47: #{tpu_custom_call.1} parent=11 // pred_region
          _
        $region48: #{tpu_custom_call.1} parent=11 // pred_fallthru
          _
        // Predicated region
        $region49: #{tpu_custom_call.1} parent=11 // pred_check
          %p346 = pneg %p257
        $region50: #{tpu_custom_call.1} parent=11 // pred_check_branch
          %348 = sbr.rel (%p346) target = $region52
        $region51: #{tpu_custom_call.1} parent=11 // pred_region
          _
        $region52: #{tpu_custom_call.1} parent=11 // pred_fallthru
          _
        // Predicated region
        $region53: #{tpu_custom_call.1} parent=11 // pred_check
          %p349 = pneg %p278
        $region54: #{tpu_custom_call.1} parent=11 // pred_check_branch
          %351 = sbr.rel (%p349) target = $region56
        $region55: #{tpu_custom_call.1} parent=11 // pred_region
          _
        $region56: #{tpu_custom_call.1} parent=11 // pred_fallthru
          _
      $region12: #{tpu_custom_call.1} parent=5 // pred_fallthru
        _
      %p352 = scmp.lt.s32.totalorder %s21, 2
      // Predicated region
      $region57: #{tpu_custom_call.1} parent=5 // pred_check
        %p353 = pneg %p352
      $region58: #{tpu_custom_call.1} parent=5 // pred_check_branch
        %355 = sbr.rel (%p353) target = $region60
      $region59: #{tpu_custom_call.1} parent=5 // pred_region
        // Predicated region
        $region61: #{tpu_custom_call.1} parent=59 // pred_check
          %p356 = pneg %p41
        $region62: #{tpu_custom_call.1} parent=59 // pred_check_branch
          %358 = sbr.rel (%p356) target = $region64
        $region63: #{tpu_custom_call.1} parent=59 // pred_region
          %p359 = scmp.lt.s32.totalorder %s21, 1
          %s360 = scalar_select %p359, %s21, 1
          %s361 = smul.addr %s360, 2
          %s362 = smul.addr %s361, 8
          %s363 = scalar_lea.vmem %s0, %s362
        $region64: #{tpu_custom_call.1} parent=59 // pred_fallthru
          _
      $region60: #{tpu_custom_call.1} parent=5 // pred_fallthru
        _
      %p364 = scmp.le.s32.totalorder 1, %s21
      %p365 = scmp.lt.s32.totalorder %s21, 3
      %p366 = pnand %p364, %p365
      %p367 = pneg %p366
      // Predicated region
      $region65: #{tpu_custom_call.1} parent=5 // pred_check
        _
      $region66: #{tpu_custom_call.1} parent=5 // pred_check_branch
        %369 = sbr.rel (%p366) target = $region68
      $region67: #{tpu_custom_call.1} parent=5 // pred_region
        %s370 = ssub.s32 %s21, 1
        %p371 = scmp.lt.s32.totalorder %s26, 1
        %s372 = scalar_select %p371, %s26, 1
        %s373 = smul.addr %s372, 2
        %s374 = smul.addr %s373, 8
        %s375 = scalar_lea.vmem %s0, %s374
        %p376 = pneg %p47
        %p377 = pneg %p44
        %p378 = pneg %p68
        %p379 = pneg %p65
        %p380 = pneg %p89
        %p381 = pneg %p86
        %p382 = pneg %p110
        %p383 = pneg %p107
        %p384 = pneg %p131
        %p385 = pneg %p128
        %p386 = pneg %p152
        %p387 = pneg %p149
        %p388 = pneg %p173
        %p389 = pneg %p170
        %p390 = pneg %p194
        %p391 = pneg %p191
        %p392 = pneg %p215
        %p393 = pneg %p212
        %p394 = pneg %p236
        %p395 = pneg %p233
        %p396 = pneg %p257
        %p397 = pneg %p254
        %p398 = pneg %p278
        %p399 = pneg %p275
        %p400 = pneg %p304
        %p401 = pneg %p301
        %s402 = sand.u32 %s291, 1
        %s403 = scalar_lea.sflag [#allocation7], %s402
        %s404 = sand.u32 %s291, 1
        %s405 = smul.addr %s404, 16
        %s406 = scalar_lea.vmem [#allocation6], %s405
        %p407 = scmp.lt.s32.totalorder %s26, 1
        %s408 = scalar_select %p407, %s26, 1
        %s409 = smul.addr %s408, 2
        %s410 = smul.addr %s409, 8
        %s411 = scalar_lea.vmem %s0, %s410
        %v413 = vld [vmem:[%s411] sm:$0xff]
        %v414 = vld [vmem:[%s411 + $0x8] sm:$0xff]
        %v415 = vld [vmem:[%s2] sm:$0xff]
        %417 = vset.pattern.permute.xlu0 0
        %418 = vperm.xlu0 %417, %v415
        %v419 = vpop.permute.xlu0 %418
        %v421 = vmul.f32 %v413, %v419
        %v422 = vmul.f32 %v414, %v419
        %v423 = vld [vmem:[%s3] sm:$0xff]
        %425 = vset.pattern.permute.xlu0 0
        %426 = vperm.xlu0 %425, %v423
        %v427 = vpop.permute.xlu0 %426
        %v429 = vadd.f32 %v421, %v427
        %v430 = vadd.f32 %v422, %v427
        %v431 = vld [vmem:[%s4] sm:$0xff]
        %433 = vset.pattern.permute.xlu0 0
        %434 = vperm.xlu0 %433, %v431
        %v435 = vpop.permute.xlu0 %434
        %v437 = vmul.f32 %v413, %v435
        %v438 = vmul.f32 %v414, %v435
        %v439 = vld [vmem:[%s5] sm:$0xff]
        %441 = vset.pattern.permute.xlu0 0
        %442 = vperm.xlu0 %441, %v439
        %v443 = vpop.permute.xlu0 %442
        %v445 = vadd.f32 %v437, %v443
        %v446 = vadd.f32 %v438, %v443
        %v447 = vmax.f32 %v445, 0.0
        %v448 = vmax.f32 %v446, 0.0
        %449 = vst [vmem:[#allocation2] sm:$0xff] 0.0
        %450 = vst [vmem:[#allocation2 + $0x8] sm:$0xff] %v429
        %451 = vst [vmem:[#allocation2 + $0x10] sm:$0xff] %v430
        %452 = vst [vmem:[#allocation2 + $0x18] sm:$0xff] 0.0
        %453 = vst [vmem:[#allocation2 + $0x20] sm:$0xff] 0.0
        %454 = vst [vmem:[#allocation2 + $0x28] sm:$0xff] %v447
        %455 = vst [vmem:[#allocation2 + $0x30] sm:$0xff] %v448
        %456 = vst [vmem:[#allocation2 + $0x38] sm:$0xff] 0.0
        %v457 = vld [vmem:[#allocation2] sm:$0xff]
        %v458 = vld [vmem:[#allocation2 + $0x8] sm:$0xff]
        %v459 = vld [vmem:[#allocation2 + $0x10] sm:$0xff]
        %v460 = vld [vmem:[#allocation2 + $0x20] sm:$0xff]
        %v461 = vld [vmem:[#allocation2 + $0x28] sm:$0xff]
        %v462 = vld [vmem:[#allocation2 + $0x30] sm:$0xff]
        %v463 = vld [vmem:[%s1] ss:$8 sm:$0x3]
        %v465 = vlaneseq
        %v466 = vshrl.u32 %v465, 7
        %v467 = vsub.s32 0, %v466
        %v468 = vrot.slane %v463, %v467
        %v469 = vlaneseq
        %v470 = vshrl.u32 %v469, 7
        %v471 = vsub.s32 1, %v470
        %v472 = vrot.slane %v463, %v471
        %473 = vrot.lane.b32.xlu0 %v468, 111
        %v474 = vpop.permute.xlu0 %473
        %475 = vrot.lane.b32.xlu0 %v472, 111
        %v476 = vpop.permute.xlu0 %475
        %vm477 = vcmask 908288
        %v478 = vsel %vm477, %v474, %v476
        %v482 = vmul.f32 %v457, %v474
        %v483 = vmul.f32 %v458, %v478
        %v484 = vmul.f32 %v459, %v476
        %v485 = vmul.f32 %v460, %v474
        %v486 = vmul.f32 %v461, %v478
        %v487 = vmul.f32 %v462, %v476
        %494 = vrot.lane.b32.xlu0 %v482, 17
        %v495 = vpop.permute.xlu0 %494
        %496 = vrot.lane.b32.xlu0 %v483, 17
        %v497 = vpop.permute.xlu0 %496
        %498 = vrot.lane.b32.xlu0 %v484, 17
        %v499 = vpop.permute.xlu0 %498
        %500 = vrot.lane.b32.xlu0 %v485, 17
        %v501 = vpop.permute.xlu0 %500
        %502 = vrot.lane.b32.xlu0 %v486, 17
        %v503 = vpop.permute.xlu0 %502
        %504 = vrot.lane.b32.xlu0 %v487, 17
        %v505 = vpop.permute.xlu0 %504
        %vm506 = vcmask 138240
        %v507 = vsel %vm506, %v495, %v497
        %v508 = vsel %vm506, %v497, %v499
        %v509 = vsel %vm506, %v501, %v503
        %v510 = vsel %vm506, %v503, %v505
        %515 = vst [vmem:[#allocation4] sm:$0xff] %v507
        %516 = vst [vmem:[#allocation4 + $0x8] sm:$0xff] %v508
        %517 = vst [vmem:[#allocation4 + $0x10] sm:$0xff] %v509
        %518 = vst [vmem:[#allocation4 + $0x18] sm:$0xff] %v510
        %v519 = vld [vmem:[#allocation2] sm:$0xff]
        %v520 = vld [vmem:[#allocation2 + $0x8] sm:$0xff]
        %v521 = vld [vmem:[#allocation2 + $0x10] sm:$0xff]
        %v522 = vld [vmem:[#allocation2 + $0x20] sm:$0xff]
        %v523 = vld [vmem:[#allocation2 + $0x28] sm:$0xff]
        %v524 = vld [vmem:[#allocation2 + $0x30] sm:$0xff]
        %s525 = scalar_lea.vmem %s1, 1
        %v526 = vld [vmem:[%s525] ss:$8 sm:$0x3]
        %v528 = vlaneseq
        %v529 = vshrl.u32 %v528, 7
        %v530 = vsub.s32 0, %v529
        %v531 = vrot.slane %v526, %v530
        %v532 = vlaneseq
        %v533 = vshrl.u32 %v532, 7
        %v534 = vsub.s32 1, %v533
        %v535 = vrot.slane %v526, %v534
        %536 = vrot.lane.b32.xlu0 %v531, 112
        %v537 = vpop.permute.xlu0 %536
        %538 = vrot.lane.b32.xlu0 %v535, 112
        %v539 = vpop.permute.xlu0 %538
        %vm540 = vcmask 916480
        %v541 = vsel %vm540, %v537, %v539
        %v545 = vmul.f32 %v519, %v537
        %v546 = vmul.f32 %v520, %v541
        %v547 = vmul.f32 %v521, %v539
        %v548 = vmul.f32 %v522, %v537
        %v549 = vmul.f32 %v523, %v541
        %v550 = vmul.f32 %v524, %v539
        %557 = vrot.lane.b32.xlu0 %v545, 16
        %v558 = vpop.permute.xlu0 %557
        %559 = vrot.lane.b32.xlu0 %v546, 16
        %v560 = vpop.permute.xlu0 %559
        %561 = vrot.lane.b32.xlu0 %v547, 16
        %v562 = vpop.permute.xlu0 %561
        %563 = vrot.lane.b32.xlu0 %v548, 16
        %v564 = vpop.permute.xlu0 %563
        %565 = vrot.lane.b32.xlu0 %v549, 16
        %v566 = vpop.permute.xlu0 %565
        %567 = vrot.lane.b32.xlu0 %v550, 16
        %v568 = vpop.permute.xlu0 %567
        %vm569 = vcmask 130048
        %v570 = vsel %vm569, %v558, %v560
        %v571 = vsel %vm569, %v560, %v562
        %v572 = vsel %vm569, %v564, %v566
        %v573 = vsel %vm569, %v566, %v568
        %578 = vst [vmem:[#allocation4 + $0x20] sm:$0xff] %v570
        %579 = vst [vmem:[#allocation4 + $0x28] sm:$0xff] %v571
        %580 = vst [vmem:[#allocation4 + $0x30] sm:$0xff] %v572
        %581 = vst [vmem:[#allocation4 + $0x38] sm:$0xff] %v573
        %v582 = vld [vmem:[#allocation2] sm:$0xff]
        %v583 = vld [vmem:[#allocation2 + $0x8] sm:$0xff]
        %v584 = vld [vmem:[#allocation2 + $0x10] sm:$0xff]
        %v585 = vld [vmem:[#allocation2 + $0x20] sm:$0xff]
        %v586 = vld [vmem:[#allocation2 + $0x28] sm:$0xff]
        %v587 = vld [vmem:[#allocation2 + $0x30] sm:$0xff]
        %s588 = scalar_lea.vmem %s1, 2
        %v589 = vld [vmem:[%s588] ss:$8 sm:$0x3]
        %v591 = vlaneseq
        %v592 = vshrl.u32 %v591, 7
        %v593 = vsub.s32 0, %v592
        %v594 = vrot.slane %v589, %v593
        %v595 = vlaneseq
        %v596 = vshrl.u32 %v595, 7
        %v597 = vsub.s32 1, %v596
        %v598 = vrot.slane %v589, %v597
        %599 = vrot.lane.b32.xlu0 %v594, 113
        %v600 = vpop.permute.xlu0 %599
        %601 = vrot.lane.b32.xlu0 %v598, 113
        %v602 = vpop.permute.xlu0 %601
        %vm603 = vcmask 924672
        %v604 = vsel %vm603, %v600, %v602
        %v608 = vmul.f32 %v582, %v600
        %v609 = vmul.f32 %v583, %v604
        %v610 = vmul.f32 %v584, %v602
        %v611 = vmul.f32 %v585, %v600
        %v612 = vmul.f32 %v586, %v604
        %v613 = vmul.f32 %v587, %v602
        %620 = vrot.lane.b32.xlu0 %v608, 15
        %v621 = vpop.permute.xlu0 %620
        %622 = vrot.lane.b32.xlu0 %v609, 15
        %v623 = vpop.permute.xlu0 %622
        %624 = vrot.lane.b32.xlu0 %v610, 15
        %v625 = vpop.permute.xlu0 %624
        %626 = vrot.lane.b32.xlu0 %v611, 15
        %v627 = vpop.permute.xlu0 %626
        %628 = vrot.lane.b32.xlu0 %v612, 15
        %v629 = vpop.permute.xlu0 %628
        %630 = vrot.lane.b32.xlu0 %v613, 15
        %v631 = vpop.permute.xlu0 %630
        %vm632 = vcmask 121856
        %v633 = vsel %vm632, %v621, %v623
        %v634 = vsel %vm632, %v623, %v625
        %v635 = vsel %vm632, %v627, %v629
        %v636 = vsel %vm632, %v629, %v631
        %641 = vst [vmem:[#allocation4 + $0x40] sm:$0xff] %v633
        %642 = vst [vmem:[#allocation4 + $0x48] sm:$0xff] %v634
        %643 = vst [vmem:[#allocation4 + $0x50] sm:$0xff] %v635
        %644 = vst [vmem:[#allocation4 + $0x58] sm:$0xff] %v636
        %v645 = vld [vmem:[#allocation2] sm:$0xff]
        %v646 = vld [vmem:[#allocation2 + $0x8] sm:$0xff]
        %v647 = vld [vmem:[#allocation2 + $0x10] sm:$0xff]
        %v648 = vld [vmem:[#allocation2 + $0x20] sm:$0xff]
        %v649 = vld [vmem:[#allocation2 + $0x28] sm:$0xff]
        %v650 = vld [vmem:[#allocation2 + $0x30] sm:$0xff]
        %s651 = scalar_lea.vmem %s1, 3
        %v652 = vld [vmem:[%s651] ss:$8 sm:$0x3]
        %v654 = vlaneseq
        %v655 = vshrl.u32 %v654, 7
        %v656 = vsub.s32 0, %v655
        %v657 = vrot.slane %v652, %v656
        %v658 = vlaneseq
        %v659 = vshrl.u32 %v658, 7
        %v660 = vsub.s32 1, %v659
        %v661 = vrot.slane %v652, %v660
        %662 = vrot.lane.b32.xlu0 %v657, 127
        %v663 = vpop.permute.xlu0 %662
        %664 = vrot.lane.b32.xlu0 %v661, 127
        %v665 = vpop.permute.xlu0 %664
        %vm666 = vcmask 1039360
        %v667 = vsel %vm666, %v663, %v665
        %v671 = vmul.f32 %v645, %v663
        %v672 = vmul.f32 %v646, %v667
        %v673 = vmul.f32 %v647, %v665
        %v674 = vmul.f32 %v648, %v663
        %v675 = vmul.f32 %v649, %v667
        %v676 = vmul.f32 %v650, %v665
        %683 = vrot.lane.b32.xlu0 %v671, 1
        %v684 = vpop.permute.xlu0 %683
        %685 = vrot.lane.b32.xlu0 %v672, 1
        %v686 = vpop.permute.xlu0 %685
        %687 = vrot.lane.b32.xlu0 %v673, 1
        %v688 = vpop.permute.xlu0 %687
        %689 = vrot.lane.b32.xlu0 %v674, 1
        %v690 = vpop.permute.xlu0 %689
        %691 = vrot.lane.b32.xlu0 %v675, 1
        %v692 = vpop.permute.xlu0 %691
        %693 = vrot.lane.b32.xlu0 %v676, 1
        %v694 = vpop.permute.xlu0 %693
        %vm695 = vcmask 7168
        %v696 = vsel %vm695, %v684, %v686
        %v697 = vsel %vm695, %v686, %v688
        %v698 = vsel %vm695, %v690, %v692
        %v699 = vsel %vm695, %v692, %v694
        %704 = vst [vmem:[#allocation4 + $0x60] sm:$0xff] %v696
        %705 = vst [vmem:[#allocation4 + $0x68] sm:$0xff] %v697
        %706 = vst [vmem:[#allocation4 + $0x70] sm:$0xff] %v698
        %707 = vst [vmem:[#allocation4 + $0x78] sm:$0xff] %v699
        %v708 = vld [vmem:[#allocation2 + $0x8] sm:$0xff]
        %v709 = vld [vmem:[#allocation2 + $0x10] sm:$0xff]
        %v710 = vld [vmem:[#allocation2 + $0x28] sm:$0xff]
        %v711 = vld [vmem:[#allocation2 + $0x30] sm:$0xff]
        %s712 = scalar_lea.vmem %s1, 4
        %v713 = vld [vmem:[%s712] ss:$8 sm:$0x3]
        %v715 = vlaneseq
        %v716 = vshrl.u32 %v715, 7
        %v717 = vsub.s32 0, %v716
        %v718 = vrot.slane %v713, %v717
        %v719 = vlaneseq
        %v720 = vshrl.u32 %v719, 7
        %v721 = vsub.s32 1, %v720
        %v722 = vrot.slane %v713, %v721
        %v725 = vmul.f32 %v708, %v718
        %v726 = vmul.f32 %v709, %v722
        %v727 = vmul.f32 %v710, %v718
        %v728 = vmul.f32 %v711, %v722
        %729 = vst [vmem:[#allocation4 + $0x80] sm:$0xff] %v725
        %730 = vst [vmem:[#allocation4 + $0x88] sm:$0xff] %v726
        %731 = vst [vmem:[#allocation4 + $0x90] sm:$0xff] %v727
        %732 = vst [vmem:[#allocation4 + $0x98] sm:$0xff] %v728
        %v733 = vld [vmem:[#allocation2 + $0x8] sm:$0xff]
        %v734 = vld [vmem:[#allocation2 + $0x10] sm:$0xff]
        %v735 = vld [vmem:[#allocation2 + $0x18] sm:$0xff]
        %v736 = vld [vmem:[#allocation2 + $0x28] sm:$0xff]
        %v737 = vld [vmem:[#allocation2 + $0x30] sm:$0xff]
        %v738 = vld [vmem:[#allocation2 + $0x38] sm:$0xff]
        %s739 = scalar_lea.vmem %s1, 5
        %v740 = vld [vmem:[%s739] ss:$8 sm:$0x3]
        %v742 = vlaneseq
        %v743 = vshrl.u32 %v742, 7
        %v744 = vsub.s32 0, %v743
        %v745 = vrot.slane %v740, %v744
        %v746 = vlaneseq
        %v747 = vshrl.u32 %v746, 7
        %v748 = vsub.s32 1, %v747
        %v749 = vrot.slane %v740, %v748
        %750 = vrot.lane.b32.xlu0 %v745, 1
        %v751 = vpop.permute.xlu0 %750
        %752 = vrot.lane.b32.xlu0 %v749, 1
        %v753 = vpop.permute.xlu0 %752
        %v754 = vsel %vm695, %v751, %v753
        %v758 = vmul.f32 %v733, %v751
        %v759 = vmul.f32 %v734, %v754
        %v760 = vmul.f32 %v735, %v753
        %v761 = vmul.f32 %v736, %v751
        %v762 = vmul.f32 %v737, %v754
        %v763 = vmul.f32 %v738, %v753
        %770 = vrot.lane.b32.xlu0 %v758, 127
        %v771 = vpop.permute.xlu0 %770
        %772 = vrot.lane.b32.xlu0 %v759, 127
        %v773 = vpop.permute.xlu0 %772
        %774 = vrot.lane.b32.xlu0 %v760, 127
        %v775 = vpop.permute.xlu0 %774
        %776 = vrot.lane.b32.xlu0 %v761, 127
        %v777 = vpop.permute.xlu0 %776
        %778 = vrot.lane.b32.xlu0 %v762, 127
        %v779 = vpop.permute.xlu0 %778
        %780 = vrot.lane.b32.xlu0 %v763, 127
        %v781 = vpop.permute.xlu0 %780
        %v782 = vsel %vm666, %v771, %v773
        %v783 = vsel %vm666, %v773, %v775
        %v784 = vsel %vm666, %v777, %v779
        %v785 = vsel %vm666, %v779, %v781
        %790 = vst [vmem:[#allocation4 + $0xa0] sm:$0xff] %v782
        %791 = vst [vmem:[#allocation4 + $0xa8] sm:$0xff] %v783
        %792 = vst [vmem:[#allocation4 + $0xb0] sm:$0xff] %v784
        %793 = vst [vmem:[#allocation4 + $0xb8] sm:$0xff] %v785
        %v794 = vld [vmem:[#allocation2 + $0x8] sm:$0xff]
        %v795 = vld [vmem:[#allocation2 + $0x10] sm:$0xff]
        %v796 = vld [vmem:[#allocation2 + $0x18] sm:$0xff]
        %v797 = vld [vmem:[#allocation2 + $0x28] sm:$0xff]
        %v798 = vld [vmem:[#allocation2 + $0x30] sm:$0xff]
        %v799 = vld [vmem:[#allocation2 + $0x38] sm:$0xff]
        %s800 = scalar_lea.vmem %s1, 6
        %v801 = vld [vmem:[%s800] ss:$8 sm:$0x3]
        %v803 = vlaneseq
        %v804 = vshrl.u32 %v803, 7
        %v805 = vsub.s32 0, %v804
        %v806 = vrot.slane %v801, %v805
        %v807 = vlaneseq
        %v808 = vshrl.u32 %v807, 7
        %v809 = vsub.s32 1, %v808
        %v810 = vrot.slane %v801, %v809
        %811 = vrot.lane.b32.xlu0 %v806, 15
        %v812 = vpop.permute.xlu0 %811
        %813 = vrot.lane.b32.xlu0 %v810, 15
        %v814 = vpop.permute.xlu0 %813
        %v815 = vsel %vm632, %v812, %v814
        %v819 = vmul.f32 %v794, %v812
        %v820 = vmul.f32 %v795, %v815
        %v821 = vmul.f32 %v796, %v814
        %v822 = vmul.f32 %v797, %v812
        %v823 = vmul.f32 %v798, %v815
        %v824 = vmul.f32 %v799, %v814
        %831 = vrot.lane.b32.xlu0 %v819, 113
        %v832 = vpop.permute.xlu0 %831
        %833 = vrot.lane.b32.xlu0 %v820, 113
        %v834 = vpop.permute.xlu0 %833
        %835 = vrot.lane.b32.xlu0 %v821, 113
        %v836 = vpop.permute.xlu0 %835
        %837 = vrot.lane.b32.xlu0 %v822, 113
        %v838 = vpop.permute.xlu0 %837
        %839 = vrot.lane.b32.xlu0 %v823, 113
        %v840 = vpop.permute.xlu0 %839
        %841 = vrot.lane.b32.xlu0 %v824, 113
        %v842 = vpop.permute.xlu0 %841
        %v843 = vsel %vm603, %v832, %v834
        %v844 = vsel %vm603, %v834, %v836
        %v845 = vsel %vm603, %v838, %v840
        %v846 = vsel %vm603, %v840, %v842
        %851 = vst [vmem:[#allocation4 + $0xc0] sm:$0xff] %v843
        %852 = vst [vmem:[#allocation4 + $0xc8] sm:$0xff] %v844
        %853 = vst [vmem:[#allocation4 + $0xd0] sm:$0xff] %v845
        %854 = vst [vmem:[#allocation4 + $0xd8] sm:$0xff] %v846
        %v855 = vld [vmem:[#allocation2 + $0x8] sm:$0xff]
        %v856 = vld [vmem:[#allocation2 + $0x10] sm:$0xff]
        %v857 = vld [vmem:[#allocation2 + $0x18] sm:$0xff]
        %v858 = vld [vmem:[#allocation2 + $0x28] sm:$0xff]
        %v859 = vld [vmem:[#allocation2 + $0x30] sm:$0xff]
        %v860 = vld [vmem:[#allocation2 + $0x38] sm:$0xff]
        %s861 = scalar_lea.vmem %s1, 7
        %v862 = vld [vmem:[%s861] ss:$8 sm:$0x3]
        %v864 = vlaneseq
        %v865 = vshrl.u32 %v864, 7
        %v866 = vsub.s32 0, %v865
        %v867 = vrot.slane %v862, %v866
        %v868 = vlaneseq
        %v869 = vshrl.u32 %v868, 7
        %v870 = vsub.s32 1, %v869
        %v871 = vrot.slane %v862, %v870
        %872 = vrot.lane.b32.xlu0 %v867, 16
        %v873 = vpop.permute.xlu0 %872
        %874 = vrot.lane.b32.xlu0 %v871, 16
        %v875 = vpop.permute.xlu0 %874
        %v876 = vsel %vm569, %v873, %v875
        %v880 = vmul.f32 %v855, %v873
        %v881 = vmul.f32 %v856, %v876
        %v882 = vmul.f32 %v857, %v875
        %v883 = vmul.f32 %v858, %v873
        %v884 = vmul.f32 %v859, %v876
        %v885 = vmul.f32 %v860, %v875
        %892 = vrot.lane.b32.xlu0 %v880, 112
        %v893 = vpop.permute.xlu0 %892
        %894 = vrot.lane.b32.xlu0 %v881, 112
        %v895 = vpop.permute.xlu0 %894
        %896 = vrot.lane.b32.xlu0 %v882, 112
        %v897 = vpop.permute.xlu0 %896
        %898 = vrot.lane.b32.xlu0 %v883, 112
        %v899 = vpop.permute.xlu0 %898
        %900 = vrot.lane.b32.xlu0 %v884, 112
        %v901 = vpop.permute.xlu0 %900
        %902 = vrot.lane.b32.xlu0 %v885, 112
        %v903 = vpop.permute.xlu0 %902
        %v904 = vsel %vm540, %v893, %v895
        %v905 = vsel %vm540, %v895, %v897
        %v906 = vsel %vm540, %v899, %v901
        %v907 = vsel %vm540, %v901, %v903
        %912 = vst [vmem:[#allocation4 + $0xe0] sm:$0xff] %v904
        %913 = vst [vmem:[#allocation4 + $0xe8] sm:$0xff] %v905
        %914 = vst [vmem:[#allocation4 + $0xf0] sm:$0xff] %v906
        %915 = vst [vmem:[#allocation4 + $0xf8] sm:$0xff] %v907
        %v916 = vld [vmem:[#allocation2 + $0x8] sm:$0xff]
        %v917 = vld [vmem:[#allocation2 + $0x10] sm:$0xff]
        %v918 = vld [vmem:[#allocation2 + $0x18] sm:$0xff]
        %v919 = vld [vmem:[#allocation2 + $0x28] sm:$0xff]
        %v920 = vld [vmem:[#allocation2 + $0x30] sm:$0xff]
        %v921 = vld [vmem:[#allocation2 + $0x38] sm:$0xff]
        %s922 = scalar_lea.vmem %s1, 16
        %v923 = vld [vmem:[%s922] ss:$8 sm:$0x3]
        %v925 = vlaneseq
        %v926 = vshrl.u32 %v925, 7
        %v927 = vsub.s32 0, %v926
        %v928 = vrot.slane %v923, %v927
        %v929 = vlaneseq
        %v930 = vshrl.u32 %v929, 7
        %v931 = vsub.s32 1, %v930
        %v932 = vrot.slane %v923, %v931
        %933 = vrot.lane.b32.xlu0 %v928, 17
        %v934 = vpop.permute.xlu0 %933
        %935 = vrot.lane.b32.xlu0 %v932, 17
        %v936 = vpop.permute.xlu0 %935
        %v937 = vsel %vm506, %v934, %v936
        %v941 = vmul.f32 %v916, %v934
        %v942 = vmul.f32 %v917, %v937
        %v943 = vmul.f32 %v918, %v936
        %v944 = vmul.f32 %v919, %v934
        %v945 = vmul.f32 %v920, %v937
        %v946 = vmul.f32 %v921, %v936
        %953 = vrot.lane.b32.xlu0 %v941, 111
        %v954 = vpop.permute.xlu0 %953
        %955 = vrot.lane.b32.xlu0 %v942, 111
        %v956 = vpop.permute.xlu0 %955
        %957 = vrot.lane.b32.xlu0 %v943, 111
        %v958 = vpop.permute.xlu0 %957
        %959 = vrot.lane.b32.xlu0 %v944, 111
        %v960 = vpop.permute.xlu0 %959
        %961 = vrot.lane.b32.xlu0 %v945, 111
        %v962 = vpop.permute.xlu0 %961
        %963 = vrot.lane.b32.xlu0 %v946, 111
        %v964 = vpop.permute.xlu0 %963
        %v965 = vsel %vm477, %v954, %v956
        %v966 = vsel %vm477, %v956, %v958
        %v967 = vsel %vm477, %v960, %v962
        %v968 = vsel %vm477, %v962, %v964
        %973 = vst [vmem:[#allocation4 + $0x100] sm:$0xff] %v965
        %974 = vst [vmem:[#allocation4 + $0x108] sm:$0xff] %v966
        %975 = vst [vmem:[#allocation4 + $0x110] sm:$0xff] %v967
        %976 = vst [vmem:[#allocation4 + $0x118] sm:$0xff] %v968
        %v977 = vld [vmem:[%s6] sm:$0xff]
        %v978 = vld [vmem:[%s6 + $0x8] sm:$0xff]
        %v979 = vld [vmem:[#allocation4] sm:$0xff]
        %v980 = vld [vmem:[#allocation4 + $0x8] sm:$0xff]
        %v981 = vld [vmem:[#allocation4 + $0x10] sm:$0xff]
        %v982 = vld [vmem:[#allocation4 + $0x18] sm:$0xff]
        %v983 = vld [vmem:[#allocation4 + $0x20] sm:$0xff]
        %v984 = vld [vmem:[#allocation4 + $0x28] sm:$0xff]
        %v985 = vld [vmem:[#allocation4 + $0x30] sm:$0xff]
        %v986 = vld [vmem:[#allocation4 + $0x38] sm:$0xff]
        %v987 = vld [vmem:[#allocation4 + $0x40] sm:$0xff]
        %v988 = vld [vmem:[#allocation4 + $0x48] sm:$0xff]
        %v989 = vld [vmem:[#allocation4 + $0x50] sm:$0xff]
        %v990 = vld [vmem:[#allocation4 + $0x58] sm:$0xff]
        %v991 = vld [vmem:[#allocation4 + $0x60] sm:$0xff]
        %v992 = vld [vmem:[#allocation4 + $0x68] sm:$0xff]
        %v993 = vld [vmem:[#allocation4 + $0x70] sm:$0xff]
        %v994 = vld [vmem:[#allocation4 + $0x78] sm:$0xff]
        %v995 = vld [vmem:[#allocation4 + $0x80] sm:$0xff]
        %v996 = vld [vmem:[#allocation4 + $0x88] sm:$0xff]
        %v997 = vld [vmem:[#allocation4 + $0x90] sm:$0xff]
        %v998 = vld [vmem:[#allocation4 + $0x98] sm:$0xff]
        %v999 = vld [vmem:[#allocation4 + $0xa0] sm:$0xff]
        %v1000 = vld [vmem:[#allocation4 + $0xa8] sm:$0xff]
        %v1001 = vld [vmem:[#allocation4 + $0xb0] sm:$0xff]
        %v1002 = vld [vmem:[#allocation4 + $0xb8] sm:$0xff]
        %v1003 = vld [vmem:[#allocation4 + $0xc0] sm:$0xff]
        %v1004 = vld [vmem:[#allocation4 + $0xc8] sm:$0xff]
        %v1005 = vld [vmem:[#allocation4 + $0xd0] sm:$0xff]
        %v1006 = vld [vmem:[#allocation4 + $0xd8] sm:$0xff]
        %v1007 = vld [vmem:[#allocation4 + $0xe0] sm:$0xff]
        %v1008 = vld [vmem:[#allocation4 + $0xe8] sm:$0xff]
        %v1009 = vld [vmem:[#allocation4 + $0xf0] sm:$0xff]
        %v1010 = vld [vmem:[#allocation4 + $0xf8] sm:$0xff]
        %v1011 = vld [vmem:[#allocation4 + $0x100] sm:$0xff]
        %v1012 = vld [vmem:[#allocation4 + $0x108] sm:$0xff]
        %v1013 = vld [vmem:[#allocation4 + $0x110] sm:$0xff]
        %v1014 = vld [vmem:[#allocation4 + $0x118] sm:$0xff]
        %v1015 = vpack.c.bf16 %v981, %v979
        %v1016 = vpack.c.bf16 %v982, %v980
        %v1017 = vpack.c.bf16 %v985, %v983
        %v1018 = vpack.c.bf16 %v986, %v984
        %v1019 = vpack.c.bf16 %v989, %v987
        %v1020 = vpack.c.bf16 %v990, %v988
        %v1021 = vpack.c.bf16 %v993, %v991
        %v1022 = vpack.c.bf16 %v994, %v992
        %v1023 = vpack.c.bf16 %v997, %v995
        %v1024 = vpack.c.bf16 %v998, %v996
        %v1025 = vpack.c.bf16 %v1001, %v999
        %v1026 = vpack.c.bf16 %v1002, %v1000
        %v1027 = vpack.c.bf16 %v1005, %v1003
        %v1028 = vpack.c.bf16 %v1006, %v1004
        %v1029 = vpack.c.bf16 %v1009, %v1007
        %v1030 = vpack.c.bf16 %v1010, %v1008
        %v1031 = vpack.c.bf16 %v1013, %v1011
        %v1032 = vpack.c.bf16 %v1014, %v1012
        %v1033 = vld [vmem:[%s7] sm:$0xff]
        %v1034 = vld [vmem:[%s7 + $0x8] sm:$0xff]
        %1036 = vset.pattern.permute.xlu0 0
        %1037 = vperm.xlu0 %1036, %v1033
        %v1038 = vpop.permute.xlu0 %1037
        %1041 = vset.pattern.permute.xlu0 0
        %1042 = vperm.xlu0 %1041, %v1034
        %v1043 = vpop.permute.xlu0 %1042
        %v1047 = vunpack.c.l.b16 %v977
        %v1048 = vunpack.c.h.b16 %v977
        %v1049 = vunpack.c.l.b16 %v978
        %v1050 = vunpack.c.h.b16 %v978
        %v1051 = vpack.c.b16 %v1049, %v1047
        %v1052 = vpack.c.b16 %v1050, %v1048
        %v1055 = vsel %vm569, %v1052, 0
        %1057 = vmatprep.subr.bf16.mxu0 %v1016
        %1058 = vmatpush1.bf16.msra.mxu0 %v1015
        %1059 = vmatprep.subr.bf16.mxu0 %v1018
        %1060 = vmatpush1.bf16.msra.mxu0 %v1017
        %1061 = vmatprep.subr.bf16.mxu0 %v1020
        %1062 = vmatpush1.bf16.msra.mxu0 %v1019
        %1063 = vmatprep.subr.bf16.mxu0 %v1022
        %1064 = vmatpush1.bf16.msra.mxu0 %v1021
        %1065 = vmatprep.subr.bf16.mxu0 %v1024
        %1066 = vmatpush1.bf16.msra.mxu0 %v1023
        %1067 = vmatprep.subr.bf16.mxu0 %v1026
        %1068 = vmatpush1.bf16.msra.mxu0 %v1025
        %1069 = vmatprep.subr.bf16.mxu0 %v1028
        %1070 = vmatpush1.bf16.msra.mxu0 %v1027
        %1071 = vmatprep.subr.bf16.mxu0 %v1030
        %1072 = vmatpush1.bf16.msra.mxu0 %v1029
        %1073 = vmatprep.subr.bf16.mxu0 %v1032
        %1074 = vmatpush1.bf16.msra.mxu0 %v1031
        %1075 = vmatprep.subr.bf16.mxu0 0
        %1076 = vmatpush1.bf16.msra.mxu0 0
        %1077 = vmatprep.subr.bf16.mxu0 0
        %1078 = vmatpush1.bf16.msra.mxu0 0
        %1079 = vmatprep.subr.bf16.mxu0 0
        %1080 = vmatpush1.bf16.msra.mxu0 0
        %1081 = vmatprep.subr.bf16.mxu0 0
        %1082 = vmatpush1.bf16.msra.mxu0 0
        %1083 = vmatprep.subr.bf16.mxu0 0
        %1084 = vmatpush1.bf16.msra.mxu0 0
        %1085 = vmatprep.subr.bf16.mxu0 0
        %1086 = vmatpush1.bf16.msra.mxu0 0
        %1087 = vmatprep.subr.bf16.mxu0 0
        %1088 = vmatpush1.bf16.msra.mxu0 0
        %1089 = vmatprep.mubr.bf16.mxu0 %v1055
        %1090 = vmatmul.mubr.bf16.gmra.mrb[0].mxu0 %v1051
        %v1091 = vpop.f32.mrb[0].mxu0
        %v1092 = vadd.f32 %v1038, %v1091
        %v1093 = vpop.f32.mrb[0].mxu0
        %v1094 = vadd.f32 %v1038, %v1093
        %v1095 = vpop.f32.mrb[0].mxu0
        %v1096 = vadd.f32 %v1043, %v1095
        %v1097 = vpop.f32.mrb[0].mxu0
        %v1098 = vadd.f32 %v1043, %v1097
        %1099 = vdwg.mxu0
        %v1100 = vld [vmem:[%s8] sm:$0xff]
        %1102 = vset.pattern.permute.xlu0 0
        %1103 = vperm.xlu0 %1102, %v1100
        %v1104 = vpop.permute.xlu0 %1103
        %v1106 = vmul.f32 %v1096, %v1104
        %v1107 = vmul.f32 %v1098, %v1104
        %v1108 = vld [vmem:[%s9] sm:$0xff]
        %1110 = vset.pattern.permute.xlu0 0
        %1111 = vperm.xlu0 %1110, %v1108
        %v1112 = vpop.permute.xlu0 %1111
        %v1114 = vadd.f32 %v1106, %v1112
        %v1115 = vadd.f32 %v1107, %v1112
        %v1116 = vmax.f32 %v1114, 0.0
        %v1117 = vmax.f32 %v1115, 0.0
        %1118 = vst [vmem:[#allocation3] sm:$0xff] 0.0
        %1119 = vst [vmem:[#allocation3 + $0x8] sm:$0xff] %v1116
        %1120 = vst [vmem:[#allocation3 + $0x10] sm:$0xff] %v1117
        %1121 = vst [vmem:[#allocation3 + $0x18] sm:$0xff] 0.0
        %v1122 = vld [vmem:[#allocation3] sm:$0xff]
        %v1123 = vld [vmem:[#allocation3 + $0x8] sm:$0xff]
        %v1124 = vld [vmem:[#allocation3 + $0x10] sm:$0xff]
        %v1125 = vld [vmem:[%s1] ss:$8 sm:$0x3]
        %v1127 = vlaneseq
        %v1128 = vshrl.u32 %v1127, 7
        %v1129 = vsub.s32 0, %v1128
        %v1130 = vrot.slane %v1125, %v1129
        %v1131 = vlaneseq
        %v1132 = vshrl.u32 %v1131, 7
        %v1133 = vsub.s32 1, %v1132
        %v1134 = vrot.slane %v1125, %v1133
        %1135 = vrot.lane.b32.xlu0 %v1130, 111
        %v1136 = vpop.permute.xlu0 %1135
        %1137 = vrot.lane.b32.xlu0 %v1134, 111
        %v1138 = vpop.permute.xlu0 %1137
        %v1139 = vsel %vm477, %v1136, %v1138
        %v1143 = vmul.f32 %v1122, %v1136
        %v1144 = vmul.f32 %v1123, %v1139
        %v1145 = vmul.f32 %v1124, %v1138
        %1149 = vrot.lane.b32.xlu0 %v1143, 17
        %v1150 = vpop.permute.xlu0 %1149
        %1151 = vrot.lane.b32.xlu0 %v1144, 17
        %v1152 = vpop.permute.xlu0 %1151
        %1153 = vrot.lane.b32.xlu0 %v1145, 17
        %v1154 = vpop.permute.xlu0 %1153
        %v1155 = vsel %vm506, %v1150, %v1152
        %v1156 = vsel %vm506, %v1152, %v1154
        %1159 = vst [vmem:[#allocation5] sm:$0xff] %v1155
        %1160 = vst [vmem:[#allocation5 + $0x8] sm:$0xff] %v1156
        %v1161 = vld [vmem:[#allocation3] sm:$0xff]
        %v1162 = vld [vmem:[#allocation3 + $0x8] sm:$0xff]
        %v1163 = vld [vmem:[#allocation3 + $0x10] sm:$0xff]
        %v1164 = vld [vmem:[%s525] ss:$8 sm:$0x3]
        %v1166 = vlaneseq
        %v1167 = vshrl.u32 %v1166, 7
        %v1168 = vsub.s32 0, %v1167
        %v1169 = vrot.slane %v1164, %v1168
        %v1170 = vlaneseq
        %v1171 = vshrl.u32 %v1170, 7
        %v1172 = vsub.s32 1, %v1171
        %v1173 = vrot.slane %v1164, %v1172
        %1174 = vrot.lane.b32.xlu0 %v1169, 112
        %v1175 = vpop.permute.xlu0 %1174
        %1176 = vrot.lane.b32.xlu0 %v1173, 112
        %v1177 = vpop.permute.xlu0 %1176
        %v1178 = vsel %vm540, %v1175, %v1177
        %v1182 = vmul.f32 %v1161, %v1175
        %v1183 = vmul.f32 %v1162, %v1178
        %v1184 = vmul.f32 %v1163, %v1177
        %1188 = vrot.lane.b32.xlu0 %v1182, 16
        %v1189 = vpop.permute.xlu0 %1188
        %1190 = vrot.lane.b32.xlu0 %v1183, 16
        %v1191 = vpop.permute.xlu0 %1190
        %1192 = vrot.lane.b32.xlu0 %v1184, 16
        %v1193 = vpop.permute.xlu0 %1192
        %v1194 = vsel %vm569, %v1189, %v1191
        %v1195 = vsel %vm569, %v1191, %v1193
        %1198 = vst [vmem:[#allocation5 + $0x10] sm:$0xff] %v1194
        %1199 = vst [vmem:[#allocation5 + $0x18] sm:$0xff] %v1195
        %v1200 = vld [vmem:[#allocation3] sm:$0xff]
        %v1201 = vld [vmem:[#allocation3 + $0x8] sm:$0xff]
        %v1202 = vld [vmem:[#allocation3 + $0x10] sm:$0xff]
        %v1203 = vld [vmem:[%s588] ss:$8 sm:$0x3]
        %v1205 = vlaneseq
        %v1206 = vshrl.u32 %v1205, 7
        %v1207 = vsub.s32 0, %v1206
        %v1208 = vrot.slane %v1203, %v1207
        %v1209 = vlaneseq
        %v1210 = vshrl.u32 %v1209, 7
        %v1211 = vsub.s32 1, %v1210
        %v1212 = vrot.slane %v1203, %v1211
        %1213 = vrot.lane.b32.xlu0 %v1208, 113
        %v1214 = vpop.permute.xlu0 %1213
        %1215 = vrot.lane.b32.xlu0 %v1212, 113
        %v1216 = vpop.permute.xlu0 %1215
        %v1217 = vsel %vm603, %v1214, %v1216
        %v1221 = vmul.f32 %v1200, %v1214
        %v1222 = vmul.f32 %v1201, %v1217
        %v1223 = vmul.f32 %v1202, %v1216
        %1227 = vrot.lane.b32.xlu0 %v1221, 15
        %v1228 = vpop.permute.xlu0 %1227
        %1229 = vrot.lane.b32.xlu0 %v1222, 15
        %v1230 = vpop.permute.xlu0 %1229
        %1231 = vrot.lane.b32.xlu0 %v1223, 15
        %v1232 = vpop.permute.xlu0 %1231
        %v1233 = vsel %vm632, %v1228, %v1230
        %v1234 = vsel %vm632, %v1230, %v1232
        %1237 = vst [vmem:[#allocation5 + $0x20] sm:$0xff] %v1233
        %1238 = vst [vmem:[#allocation5 + $0x28] sm:$0xff] %v1234
        %v1239 = vld [vmem:[#allocation3] sm:$0xff]
        %v1240 = vld [vmem:[#allocation3 + $0x8] sm:$0xff]
        %v1241 = vld [vmem:[#allocation3 + $0x10] sm:$0xff]
        %v1242 = vld [vmem:[%s651] ss:$8 sm:$0x3]
        %v1244 = vlaneseq
        %v1245 = vshrl.u32 %v1244, 7
        %v1246 = vsub.s32 0, %v1245
        %v1247 = vrot.slane %v1242, %v1246
        %v1248 = vlaneseq
        %v1249 = vshrl.u32 %v1248, 7
        %v1250 = vsub.s32 1, %v1249
        %v1251 = vrot.slane %v1242, %v1250
        %1252 = vrot.lane.b32.xlu0 %v1247, 127
        %v1253 = vpop.permute.xlu0 %1252
        %1254 = vrot.lane.b32.xlu0 %v1251, 127
        %v1255 = vpop.permute.xlu0 %1254
        %v1256 = vsel %vm666, %v1253, %v1255
        %v1260 = vmul.f32 %v1239, %v1253
        %v1261 = vmul.f32 %v1240, %v1256
        %v1262 = vmul.f32 %v1241, %v1255
        %1266 = vrot.lane.b32.xlu0 %v1260, 1
        %v1267 = vpop.permute.xlu0 %1266
        %1268 = vrot.lane.b32.xlu0 %v1261, 1
        %v1269 = vpop.permute.xlu0 %1268
        %1270 = vrot.lane.b32.xlu0 %v1262, 1
        %v1271 = vpop.permute.xlu0 %1270
        %v1272 = vsel %vm695, %v1267, %v1269
        %v1273 = vsel %vm695, %v1269, %v1271
        %1276 = vst [vmem:[#allocation5 + $0x30] sm:$0xff] %v1272
        %1277 = vst [vmem:[#allocation5 + $0x38] sm:$0xff] %v1273
        %v1278 = vld [vmem:[#allocation3 + $0x8] sm:$0xff]
        %v1279 = vld [vmem:[#allocation3 + $0x10] sm:$0xff]
        %v1280 = vld [vmem:[%s712] ss:$8 sm:$0x3]
        %v1282 = vlaneseq
        %v1283 = vshrl.u32 %v1282, 7
        %v1284 = vsub.s32 0, %v1283
        %v1285 = vrot.slane %v1280, %v1284
        %v1286 = vlaneseq
        %v1287 = vshrl.u32 %v1286, 7
        %v1288 = vsub.s32 1, %v1287
        %v1289 = vrot.slane %v1280, %v1288
        %v1292 = vmul.f32 %v1278, %v1285
        %v1293 = vmul.f32 %v1279, %v1289
        %1294 = vst [vmem:[#allocation5 + $0x40] sm:$0xff] %v1292
        %1295 = vst [vmem:[#allocation5 + $0x48] sm:$0xff] %v1293
        %v1296 = vld [vmem:[#allocation3 + $0x8] sm:$0xff]
        %v1297 = vld [vmem:[#allocation3 + $0x10] sm:$0xff]
        %v1298 = vld [vmem:[#allocation3 + $0x18] sm:$0xff]
        %v1299 = vld [vmem:[%s739] ss:$8 sm:$0x3]
        %v1301 = vlaneseq
        %v1302 = vshrl.u32 %v1301, 7
        %v1303 = vsub.s32 0, %v1302
        %v1304 = vrot.slane %v1299, %v1303
        %v1305 = vlaneseq
        %v1306 = vshrl.u32 %v1305, 7
        %v1307 = vsub.s32 1, %v1306
        %v1308 = vrot.slane %v1299, %v1307
        %1309 = vrot.lane.b32.xlu0 %v1304, 1
        %v1310 = vpop.permute.xlu0 %1309
        %1311 = vrot.lane.b32.xlu0 %v1308, 1
        %v1312 = vpop.permute.xlu0 %1311
        %v1313 = vsel %vm695, %v1310, %v1312
        %v1317 = vmul.f32 %v1296, %v1310
        %v1318 = vmul.f32 %v1297, %v1313
        %v1319 = vmul.f32 %v1298, %v1312
        %1323 = vrot.lane.b32.xlu0 %v1317, 127
        %v1324 = vpop.permute.xlu0 %1323
        %1325 = vrot.lane.b32.xlu0 %v1318, 127
        %v1326 = vpop.permute.xlu0 %1325
        %1327 = vrot.lane.b32.xlu0 %v1319, 127
        %v1328 = vpop.permute.xlu0 %1327
        %v1329 = vsel %vm666, %v1324, %v1326
        %v1330 = vsel %vm666, %v1326, %v1328
        %1333 = vst [vmem:[#allocation5 + $0x50] sm:$0xff] %v1329
        %1334 = vst [vmem:[#allocation5 + $0x58] sm:$0xff] %v1330
        %v1335 = vld [vmem:[#allocation3 + $0x8] sm:$0xff]
        %v1336 = vld [vmem:[#allocation3 + $0x10] sm:$0xff]
        %v1337 = vld [vmem:[#allocation3 + $0x18] sm:$0xff]
        %v1338 = vld [vmem:[%s800] ss:$8 sm:$0x3]
        %v1340 = vlaneseq
        %v1341 = vshrl.u32 %v1340, 7
        %v1342 = vsub.s32 0, %v1341
        %v1343 = vrot.slane %v1338, %v1342
        %v1344 = vlaneseq
        %v1345 = vshrl.u32 %v1344, 7
        %v1346 = vsub.s32 1, %v1345
        %v1347 = vrot.slane %v1338, %v1346
        %1348 = vrot.lane.b32.xlu0 %v1343, 15
        %v1349 = vpop.permute.xlu0 %1348
        %1350 = vrot.lane.b32.xlu0 %v1347, 15
        %v1351 = vpop.permute.xlu0 %1350
        %v1352 = vsel %vm632, %v1349, %v1351
        %v1356 = vmul.f32 %v1335, %v1349
        %v1357 = vmul.f32 %v1336, %v1352
        %v1358 = vmul.f32 %v1337, %v1351
        %1362 = vrot.lane.b32.xlu0 %v1356, 113
        %v1363 = vpop.permute.xlu0 %1362
        %1364 = vrot.lane.b32.xlu0 %v1357, 113
        %v1365 = vpop.permute.xlu0 %1364
        %1366 = vrot.lane.b32.xlu0 %v1358, 113
        %v1367 = vpop.permute.xlu0 %1366
        %v1368 = vsel %vm603, %v1363, %v1365
        %v1369 = vsel %vm603, %v1365, %v1367
        %1372 = vst [vmem:[#allocation5 + $0x60] sm:$0xff] %v1368
        %1373 = vst [vmem:[#allocation5 + $0x68] sm:$0xff] %v1369
        %v1374 = vld [vmem:[#allocation3 + $0x8] sm:$0xff]
        %v1375 = vld [vmem:[#allocation3 + $0x10] sm:$0xff]
        %v1376 = vld [vmem:[#allocation3 + $0x18] sm:$0xff]
        %v1377 = vld [vmem:[%s861] ss:$8 sm:$0x3]
        %v1379 = vlaneseq
        %v1380 = vshrl.u32 %v1379, 7
        %v1381 = vsub.s32 0, %v1380
        %v1382 = vrot.slane %v1377, %v1381
        %v1383 = vlaneseq
        %v1384 = vshrl.u32 %v1383, 7
        %v1385 = vsub.s32 1, %v1384
        %v1386 = vrot.slane %v1377, %v1385
        %1387 = vrot.lane.b32.xlu0 %v1382, 16
        %v1388 = vpop.permute.xlu0 %1387
        %1389 = vrot.lane.b32.xlu0 %v1386, 16
        %v1390 = vpop.permute.xlu0 %1389
        %v1391 = vsel %vm569, %v1388, %v1390
        %v1395 = vmul.f32 %v1374, %v1388
        %v1396 = vmul.f32 %v1375, %v1391
        %v1397 = vmul.f32 %v1376, %v1390
        %1401 = vrot.lane.b32.xlu0 %v1395, 112
        %v1402 = vpop.permute.xlu0 %1401
        %1403 = vrot.lane.b32.xlu0 %v1396, 112
        %v1404 = vpop.permute.xlu0 %1403
        %1405 = vrot.lane.b32.xlu0 %v1397, 112
        %v1406 = vpop.permute.xlu0 %1405
        %v1407 = vsel %vm540, %v1402, %v1404
        %v1408 = vsel %vm540, %v1404, %v1406
        %1411 = vst [vmem:[#allocation5 + $0x70] sm:$0xff] %v1407
        %1412 = vst [vmem:[#allocation5 + $0x78] sm:$0xff] %v1408
        %v1413 = vld [vmem:[#allocation3 + $0x8] sm:$0xff]
        %v1414 = vld [vmem:[#allocation3 + $0x10] sm:$0xff]
        %v1415 = vld [vmem:[#allocation3 + $0x18] sm:$0xff]
        %v1416 = vld [vmem:[%s922] ss:$8 sm:$0x3]
        %v1418 = vlaneseq
        %v1419 = vshrl.u32 %v1418, 7
        %v1420 = vsub.s32 0, %v1419
        %v1421 = vrot.slane %v1416, %v1420
        %v1422 = vlaneseq
        %v1423 = vshrl.u32 %v1422, 7
        %v1424 = vsub.s32 1, %v1423
        %v1425 = vrot.slane %v1416, %v1424
        %1426 = vrot.lane.b32.xlu0 %v1421, 17
        %v1427 = vpop.permute.xlu0 %1426
        %1428 = vrot.lane.b32.xlu0 %v1425, 17
        %v1429 = vpop.permute.xlu0 %1428
        %v1430 = vsel %vm506, %v1427, %v1429
        %v1434 = vmul.f32 %v1413, %v1427
        %v1435 = vmul.f32 %v1414, %v1430
        %v1436 = vmul.f32 %v1415, %v1429
        %1440 = vrot.lane.b32.xlu0 %v1434, 111
        %v1441 = vpop.permute.xlu0 %1440
        %1442 = vrot.lane.b32.xlu0 %v1435, 111
        %v1443 = vpop.permute.xlu0 %1442
        %1444 = vrot.lane.b32.xlu0 %v1436, 111
        %v1445 = vpop.permute.xlu0 %1444
        %v1446 = vsel %vm477, %v1441, %v1443
        %v1447 = vsel %vm477, %v1443, %v1445
        %1450 = vst [vmem:[#allocation5 + $0x80] sm:$0xff] %v1446
        %1451 = vst [vmem:[#allocation5 + $0x88] sm:$0xff] %v1447
        %v1452 = vld [vmem:[%s10] sm:$0xf]
        %v1453 = vld [vmem:[#allocation5] sm:$0xff]
        %v1454 = vld [vmem:[#allocation5 + $0x8] sm:$0xff]
        %v1455 = vld [vmem:[#allocation5 + $0x10] sm:$0xff]
        %v1456 = vld [vmem:[#allocation5 + $0x18] sm:$0xff]
        %v1457 = vld [vmem:[#allocation5 + $0x20] sm:$0xff]
        %v1458 = vld [vmem:[#allocation5 + $0x28] sm:$0xff]
        %v1459 = vld [vmem:[#allocation5 + $0x30] sm:$0xff]
        %v1460 = vld [vmem:[#allocation5 + $0x38] sm:$0xff]
        %v1461 = vld [vmem:[#allocation5 + $0x40] sm:$0xff]
        %v1462 = vld [vmem:[#allocation5 + $0x48] sm:$0xff]
        %v1463 = vld [vmem:[#allocation5 + $0x50] sm:$0xff]
        %v1464 = vld [vmem:[#allocation5 + $0x58] sm:$0xff]
        %v1465 = vld [vmem:[#allocation5 + $0x60] sm:$0xff]
        %v1466 = vld [vmem:[#allocation5 + $0x68] sm:$0xff]
        %v1467 = vld [vmem:[#allocation5 + $0x70] sm:$0xff]
        %v1468 = vld [vmem:[#allocation5 + $0x78] sm:$0xff]
        %v1469 = vld [vmem:[#allocation5 + $0x80] sm:$0xff]
        %v1470 = vld [vmem:[#allocation5 + $0x88] sm:$0xff]
        %v1471 = vpack.c.bf16 %v1455, %v1453
        %v1472 = vpack.c.bf16 %v1456, %v1454
        %v1473 = vpack.c.bf16 %v1459, %v1457
        %v1474 = vpack.c.bf16 %v1460, %v1458
        %v1475 = vpack.c.bf16 %v1463, %v1461
        %v1476 = vpack.c.bf16 %v1464, %v1462
        %v1477 = vpack.c.bf16 %v1467, %v1465
        %v1478 = vpack.c.bf16 %v1468, %v1466
        %v1479 = vpack.c.bf16 %v1469, %v1469
        %v1480 = vpack.c.bf16 %v1470, %v1470
        %v1481 = vld [vmem:[%s11] sm:$0xff]
        %1483 = vset.pattern.permute.xlu0 0
        %1484 = vperm.xlu0 %1483, %v1481
        %v1485 = vpop.permute.xlu0 %1484
        %vm1487 = vcmask 588800
        %v1489 = vsel %vm1487, %v1452, 0
        %vm1491 = vcmask 1043456
        %v1493 = vsel %vm1491, %v1479, 0
        %v1496 = vsel %vm1491, %v1480, 0
        %1498 = vmatprep.subr.bf16.mxu0 %v1472
        %1499 = vmatpush1.bf16.msra.mxu0 %v1471
        %1500 = vmatprep.subr.bf16.mxu0 %v1474
        %1501 = vmatpush1.bf16.msra.mxu0 %v1473
        %1502 = vmatprep.subr.bf16.mxu0 %v1476
        %1503 = vmatpush1.bf16.msra.mxu0 %v1475
        %1504 = vmatprep.subr.bf16.mxu0 %v1478
        %1505 = vmatpush1.bf16.msra.mxu0 %v1477
        %1506 = vmatprep.subr.bf16.mxu0 %v1496
        %1507 = vmatpush1.bf16.msra.mxu0 %v1493
        %1508 = vmatprep.subr.bf16.mxu0 0
        %1509 = vmatpush1.bf16.msra.mxu0 0
        %1510 = vmatprep.subr.bf16.mxu0 0
        %1511 = vmatpush1.bf16.msra.mxu0 0
        %1512 = vmatprep.subr.bf16.mxu0 0
        %1513 = vmatpush1.bf16.msra.mxu0 0
        %1514 = vmatprep.subr.bf16.mxu0 0
        %1515 = vmatpush1.bf16.msra.mxu0 0
        %1516 = vmatprep.subr.bf16.mxu0 0
        %1517 = vmatpush1.bf16.msra.mxu0 0
        %1518 = vmatprep.subr.bf16.mxu0 0
        %1519 = vmatpush1.bf16.msra.mxu0 0
        %1520 = vmatprep.subr.bf16.mxu0 0
        %1521 = vmatpush1.bf16.msra.mxu0 0
        %1522 = vmatprep.subr.bf16.mxu0 0
        %1523 = vmatpush1.bf16.msra.mxu0 0
        %1524 = vmatprep.subr.bf16.mxu0 0
        %1525 = vmatpush1.bf16.msra.mxu0 0
        %1526 = vmatprep.subr.bf16.mxu0 0
        %1527 = vmatpush1.bf16.msra.mxu0 0
        %1528 = vmatprep.subr.bf16.mxu0 0
        %1529 = vmatpush1.bf16.msra.mxu0 0
        %1530 = vmatprep.mubr.bf16.mxu0 0
        %1531 = vmatmul.mubr.bf16.gmra.mrb[0].mxu0 %v1489
        %v1532 = vpop.f32.mrb[0].mxu0
        %v1533 = vadd.f32 %v1485, %v1532
        %v1534 = vpop.f32.mrb[0].mxu0
        %v1535 = vadd.f32 %v1485, %v1534
        %v1536 = vpop.f32.mrb[0].mxu0
        %v1537 = vpop.f32.mrb[0].mxu0
        %1538 = vdwg.mxu0
        %v1539 = vadd.f32 %v1533, %v1092
        %v1540 = vadd.f32 %v1535, %v1094
        %1541 = vst [vmem:[%s406] sm:$0xff] %v1539
        %1542 = vst [vmem:[%s406 + $0x8] sm:$0xff] %v1540
        %s1543 = sand.u32 %s291, 1
        %s1544 = scalar_lea.sflag [#allocation7], %s1543
        %s1545 = sand.u32 %s291, 1
        %s1546 = smul.addr %s1545, 16
        %s1547 = scalar_lea.vmem [#allocation6], %s1546
        // Predicated region
        $region69: #{tpu_custom_call.1} parent=67 // pred_check
          %p1548 = pneg %p301
        $region70: #{tpu_custom_call.1} parent=67 // pred_check_branch
          %1550 = sbr.rel (%p1548) target = $region72
        $region71: #{tpu_custom_call.1} parent=67 // pred_region
          %s1552 = ssub.s32 256, 256
          %1553 = vsyncadd %s1544, %s1552
          %s1554 = smul.addr %s26, 2
          %s1555 = smul.addr %s1554, 128
          %s1556 = scalar_lea.hbm %s12, %s1555
          %s1558 = sshll.u32 %s1547, 4
          %s1559 = int_to_ptr.vmem [resolvable:$true] %s1558
          %1561 = dma.vmem_to_hbm [thread:$0]  %s1559, 256, %s1556, %s1544
        $region72: #{tpu_custom_call.1} parent=67 // pred_fallthru
          _
      $region68: #{tpu_custom_call.1} parent=5 // pred_fallthru
        _
      %p1562 = scmp.le.s32.totalorder 2, %s21
      // Predicated region
      $region73: #{tpu_custom_call.1} parent=5 // pred_check
        %p1563 = pneg %p1562
      $region74: #{tpu_custom_call.1} parent=5 // pred_check_branch
        %1565 = sbr.rel (%p1563) target = $region76
      $region75: #{tpu_custom_call.1} parent=5 // pred_region
        %s1566 = ssub.s32 %s21, 2
        // Predicated region
        $region77: #{tpu_custom_call.1} parent=75 // pred_check
          %p1567 = pneg %p307
        $region78: #{tpu_custom_call.1} parent=75 // pred_check_branch
          %1569 = sbr.rel (%p1567) target = $region80
        $region79: #{tpu_custom_call.1} parent=75 // pred_region
          %s1570 = sand.u32 %s292, 1
          %s1571 = scalar_lea.sflag [#allocation7], %s1570
          %s1572 = sand.u32 %s292, 1
          %s1573 = smul.addr %s1572, 16
          %s1574 = scalar_lea.vmem [#allocation6], %s1573
          %1575 = dma.done %s1571, 256
        $region80: #{tpu_custom_call.1} parent=75 // pred_fallthru
          _
      $region76: #{tpu_custom_call.1} parent=5 // pred_fallthru
        _
    $region6: #{tpu_custom_call.1} parent=1 // loop_footer
      %s25 = sadd.s32 1, %s21
    $region7: #{tpu_custom_call.1} parent=1 // loop_footer_branch
      %20 = sbr.rel target = $region3
    $region8: #{tpu_custom_call.1} parent=1 // loop_exit
      _
    %1576 = vsyncpa [#allocation7], 1
    %s1577 = scalar_lea.sflag [#allocation7], 1
    %1578 = vsyncpa %s1577, 1

</llo_original>
